<compile_context>
chip_gen: v6e
topology: v6e:2x2x1
jax: 0.10.0
libtpu: 0.0.40
codegen_flags: <defaults>
</compile_context>

<pallas_src>
import functools

import jax
import jax.numpy as jnp
from jax.experimental import pallas as pl
from jax.experimental.pallas import tpu as pltpu


LANE = 128  # lane width / feature padding granularity


def _round_up(n, m):
    return ((n + m - 1) // m) * m


def _pad_to(a, shape):
    pads = [(0, t - s) for s, t in zip(a.shape, shape)]
    return jnp.pad(a, pads)


def _dropout_keep(shape, row_off_u32, seed_u32, salt, p):
    """Counter-based hash -> boolean keep mask with P(keep) ~= 1 - p.

    Pure jnp integer ops (no pltpu.prng_*), so it lowers on the Mosaic TPU
    backend and under interpret mode alike.  Mask depends on (seed, global row,
    column, layer salt), so different grid tiles / layers get different masks.
    """
    rows = jax.lax.broadcasted_iota(jnp.int32, shape, 0).astype(jnp.uint32)
    rows = rows + row_off_u32
    cols = jax.lax.broadcasted_iota(jnp.int32, shape, 1).astype(jnp.uint32)
    h = rows * jnp.uint32(0x9E3779B1)
    h = h ^ (cols * jnp.uint32(0x85EBCA77))
    h = h ^ (seed_u32 * jnp.uint32(0xC2B2AE3D) + jnp.uint32(salt))
    # murmur3-style finalizer for avalanche
    h = (h ^ (h >> 16)) * jnp.uint32(0x7FEB352D)
    h = (h ^ (h >> 15)) * jnp.uint32(0x846CA68B)
    h = h ^ (h >> 16)
    # 24 uniform bits compared against an integer threshold (signed-safe compare;
    # no float convert / multiply on the VALU path).
    r = (h >> 8).astype(jnp.int32)
    thr = jnp.int32(min(int(round(p * float(1 << 24))), (1 << 24) - 1))
    return r >= thr


def mlp_kernel(seed_ref, x_ref, *refs, tile_rows, dropout_ps, output_size):
    # refs = [w1, b1, w2, b2, ..., wo, bo, o_ref]
    o_ref = refs[-1]
    wo_ref, bo_ref = refs[-3], refs[-2]
    hidden_refs = refs[:-3]

    seed_u32 = seed_ref[0].astype(jnp.uint32)
    row_off = (pl.program_id(0) * tile_rows).astype(jnp.uint32)

    h = x_ref[...].astype(jnp.float32)  # x = x.float()

    for l, p in enumerate(dropout_ps):
        w_ref = hidden_refs[2 * l]
        b_ref = hidden_refs[2 * l + 1]
        # Linear (bf16 operands, f32 accumulation on the MXU)
        h = jnp.dot(h.astype(w_ref.dtype), w_ref[...],
                    preferred_element_type=jnp.float32)
        h = h + b_ref[...].astype(jnp.float32)
        # hidden activation (functional.relu)
        h = jnp.maximum(h, 0.0)
        # functional.dropout(p, training=True): zero w.p. p, scale kept by 1/(1-p)
        if p > 0.0:
            keep = _dropout_keep(h.shape, row_off, seed_u32, salt=l + 1, p=p)
            h = jnp.where(keep, h * jnp.float32(1.0 / (1.0 - p)), jnp.float32(0.0))

    # final fully connected layer
    logits = jnp.dot(h.astype(wo_ref.dtype), wo_ref[...],
                     preferred_element_type=jnp.float32)
    logits = logits + bo_ref[...].astype(jnp.float32)

    # output activation chosen by output_size (1 -> relu, 2 -> sigmoid, >2 -> softmax)
    if output_size == 1:
        out = jnp.maximum(logits, 0.0)
    elif output_size == 2:
        out = 1.0 / (1.0 + jnp.exp(-logits))
    else:
        # mask lane-padding columns so they do not pollute the softmax
        cols = jax.lax.broadcasted_iota(jnp.int32, logits.shape, 1)
        logits = jnp.where(cols < output_size, logits, jnp.float32(-1e30))
        m = jnp.max(logits, axis=-1, keepdims=True)
        e = jnp.exp(logits - m)
        out = e / jnp.sum(e, axis=-1, keepdims=True)

    o_ref[...] = out.astype(o_ref.dtype)


def mlp_forward(x, weights, biases, *, seed, dropout_ps, output_size,
                tile_rows=128, vmem_limit_bytes=32 * 1024 * 1024):
    """MLP forward pass as one batch-tiled pallas_call.

    weights[i]: (in_features, out_features) float array (PyTorch Linear weight,
                transposed), last entry is the output layer.
    biases[i]:  (out_features,) or (1, out_features) float array.
    """
    assert len(weights) == len(biases) == len(dropout_ps) + 1
    B, d_in = x.shape

    # Lane-dense padded feature sizes and padded batch.
    dims = [d_in] + [w.shape[1] for w in weights]
    pdims = [_round_up(d, LANE) for d in dims]
    b_pad = _round_up(B, tile_rows)

    x_p = _pad_to(x.astype(jnp.float32), (b_pad, pdims[0]))

    params_flat = []
    param_specs = []
    for i, (w, b) in enumerate(zip(weights, biases)):
        w_p = _pad_to(w.astype(jnp.float32),
                      (pdims[i], pdims[i + 1])).astype(jnp.bfloat16)
        b_p = _pad_to(jnp.reshape(b, (1, -1)).astype(jnp.float32),
                      (1, pdims[i + 1]))
        params_flat += [w_p, b_p]
        # Constant block index -> DMA'd once, resident across all grid steps.
        param_specs += [
            pl.BlockSpec(w_p.shape, lambda bidx, seed_ref: (0, 0)),
            pl.BlockSpec(b_p.shape, lambda bidx, seed_ref: (0, 0)),
        ]

    seed_arr = jnp.asarray([seed], dtype=jnp.int32)
    grid = (b_pad // tile_rows,)

    x_spec = pl.BlockSpec((tile_rows, pdims[0]), lambda bidx, seed_ref: (bidx, 0))
    out_spec = pl.BlockSpec((tile_rows, pdims[-1]), lambda bidx, seed_ref: (bidx, 0))

    kernel = functools.partial(
        mlp_kernel,
        tile_rows=tile_rows,
        dropout_ps=tuple(float(p) for p in dropout_ps),
        output_size=int(output_size),
    )

    out = pl.pallas_call(
        kernel,
        out_shape=jax.ShapeDtypeStruct((b_pad, pdims[-1]), jnp.float32),
        grid_spec=pltpu.PrefetchScalarGridSpec(
            num_scalar_prefetch=1,
            grid=grid,
            in_specs=[x_spec] + param_specs,
            out_specs=out_spec,
        ),
        compiler_params=pltpu.CompilerParams(
            dimension_semantics=("parallel",),
            vmem_limit_bytes=vmem_limit_bytes,
        ),
    )(seed_arr, x_p, *params_flat)

    return out[:B, :output_size]


if __name__ == "__main__":
    # Small shapes consistent with the module: batch=256 (tiled 128 per grid step),
    # input_size=32, two hidden layers of 64 neurons, output_size=4 -> softmax.
    B, D_IN, H1, H2, D_OUT = 256, 32, 64, 64, 4
    DROPOUT_PS = (0.1, 0.2)

    key = jax.random.PRNGKey(0)
    kx, k1, k2, k3, kb1, kb2, kb3 = jax.random.split(key, 7)

    x = jax.random.normal(kx, (B, D_IN), dtype=jnp.float32)

    # Deterministic parameter init (Kaiming-uniform-like scale), stored as
    # (in_features, out_features) so the kernel computes x @ W + b.
    def linear_init(kw, kb, fan_in, fan_out):
        bound = 1.0 / jnp.sqrt(jnp.float32(fan_in))
        w = jax.random.uniform(kw, (fan_in, fan_out), jnp.float32, -bound, bound)
        b = jax.random.uniform(kb, (fan_out,), jnp.float32, -bound, bound)
        return w, b

    w1, b1 = linear_init(k1, kb1, D_IN, H1)
    w2, b2 = linear_init(k2, kb2, H1, H2)
    wo, bo = linear_init(k3, kb3, H2, D_OUT)

    out = mlp_forward(
        x, [w1, w2, wo], [b1, b2, bo],
        seed=42, dropout_ps=DROPOUT_PS, output_size=D_OUT, tile_rows=128,
    )
    out = jax.block_until_ready(out)

    assert out.shape == (B, D_OUT)
    assert bool(jnp.all(jnp.isfinite(out)))
    # softmax rows must sum to ~1
    assert bool(jnp.allclose(jnp.sum(out, axis=-1), 1.0, atol=1e-5))

    print("KERNEL_OK")
</pallas_src>

<mosaic_0001>
module attributes {stable_mosaic.version = 11 : i64} {
  func.func @mlp_kernel(%arg0: i32, %arg1: memref<1xi32, #tpu.memory_space<smem>>, %arg2: memref<128x128xf32, #tpu.memory_space<vmem>>, %arg3: memref<128x128xbf16, #tpu.memory_space<vmem>>, %arg4: memref<1x128xf32, #tpu.memory_space<vmem>>, %arg5: memref<128x128xbf16, #tpu.memory_space<vmem>>, %arg6: memref<1x128xf32, #tpu.memory_space<vmem>>, %arg7: memref<128x128xbf16, #tpu.memory_space<vmem>>, %arg8: memref<1x128xf32, #tpu.memory_space<vmem>>, %arg9: memref<128x128xf32, #tpu.memory_space<vmem>>) attributes {dimension_semantics = [#tpu.dimension_semantics<parallel>], iteration_bounds = array<i64: 2>, scalar_prefetch = 1 : i64, scratch_operands = 0 : i64, tpu.core_type = #tpu.core_type<tc>, window_params = [{transform_indices = @transform_0, window_bounds = array<i64: 128, 128>}, {pipeline_mode = #tpu.pipeline_mode<synchronous>, transform_indices = @transform_1, window_bounds = array<i64: 128, 128>}, {pipeline_mode = #tpu.pipeline_mode<synchronous>, transform_indices = @transform_2, window_bounds = array<i64: 1, 128>}, {pipeline_mode = #tpu.pipeline_mode<synchronous>, transform_indices = @transform_3, window_bounds = array<i64: 128, 128>}, {pipeline_mode = #tpu.pipeline_mode<synchronous>, transform_indices = @transform_4, window_bounds = array<i64: 1, 128>}, {pipeline_mode = #tpu.pipeline_mode<synchronous>, transform_indices = @transform_5, window_bounds = array<i64: 128, 128>}, {pipeline_mode = #tpu.pipeline_mode<synchronous>, transform_indices = @transform_6, window_bounds = array<i64: 1, 128>}, {transform_indices = @transform_7, window_bounds = array<i64: 128, 128>}]} {
    %c0 = arith.constant 0 : index
    %0 = memref.load %arg1[%c0] : memref<1xi32, #tpu.memory_space<smem>>
    %c128_i32 = arith.constant 128 : i32
    %1 = arith.muli %arg0, %c128_i32 : i32
    %c0_0 = arith.constant 0 : index
    %c0_1 = arith.constant 0 : index
    %2 = vector.load %arg2[%c0_0, %c0_1] : memref<128x128xf32, #tpu.memory_space<vmem>>, vector<128x128xf32>
    %3 = arith.truncf %2 : vector<128x128xf32> to vector<128x128xbf16>
    %c0_2 = arith.constant 0 : index
    %c0_3 = arith.constant 0 : index
    %4 = vector.load %arg3[%c0_2, %c0_3] : memref<128x128xbf16, #tpu.memory_space<vmem>>, vector<128x128xbf16>
    %cst = arith.constant dense<0.000000e+00> : vector<128x128xf32>
    %5 = tpu.matmul %3, %4, %cst {dimension_numbers = #tpu.dot_dimension_numbers<[1], [0], [0], [1], [0, 0, 1, 1], [], []>} : vector<128x128xbf16>, vector<128x128xbf16>, vector<128x128xf32> -> vector<128x128xf32>
    %c0_4 = arith.constant 0 : index
    %c0_5 = arith.constant 0 : index
    %6 = vector.load %arg4[%c0_4, %c0_5] : memref<1x128xf32, #tpu.memory_space<vmem>>, vector<1x128xf32>
    %7 = vector.broadcast %6 : vector<1x128xf32> to vector<128x128xf32>
    %8 = arith.addf %5, %7 : vector<128x128xf32>
    %cst_6 = arith.constant 0.000000e+00 : f32
    %9 = vector.broadcast %cst_6 : f32 to vector<128x128xf32>
    %10 = arith.maximumf %8, %9 : vector<128x128xf32>
    %11 = tpu.iota {dimensions = array<i32: 0>} : vector<128x128xi32>
    %12 = vector.broadcast %1 : i32 to vector<128x128xi32>
    %13 = arith.addi %11, %12 : vector<128x128xi32>
    %14 = tpu.iota {dimensions = array<i32: 1>} : vector<128x128xi32>
    %c-1640531535_i32 = arith.constant -1640531535 : i32
    %15 = vector.broadcast %c-1640531535_i32 : i32 to vector<128x128xi32>
    %16 = arith.muli %13, %15 : vector<128x128xi32>
    %c-2048144777_i32 = arith.constant -2048144777 : i32
    %17 = vector.broadcast %c-2048144777_i32 : i32 to vector<128x128xi32>
    %18 = arith.muli %14, %17 : vector<128x128xi32>
    %19 = arith.xori %16, %18 : vector<128x128xi32>
    %c-1028477379_i32 = arith.constant -1028477379 : i32
    %20 = arith.muli %0, %c-1028477379_i32 : i32
    %c1_i32 = arith.constant 1 : i32
    %21 = arith.addi %20, %c1_i32 : i32
    %22 = vector.broadcast %21 : i32 to vector<128x128xi32>
    %23 = arith.xori %19, %22 : vector<128x128xi32>
    %c16_i32 = arith.constant 16 : i32
    %24 = vector.broadcast %c16_i32 : i32 to vector<128x128xi32>
    %25 = arith.shrui %23, %24 : vector<128x128xi32>
    %26 = arith.xori %23, %25 : vector<128x128xi32>
    %c2146121005_i32 = arith.constant 2146121005 : i32
    %27 = vector.broadcast %c2146121005_i32 : i32 to vector<128x128xi32>
    %28 = arith.muli %26, %27 : vector<128x128xi32>
    %c15_i32 = arith.constant 15 : i32
    %29 = vector.broadcast %c15_i32 : i32 to vector<128x128xi32>
    %30 = arith.shrui %28, %29 : vector<128x128xi32>
    %31 = arith.xori %28, %30 : vector<128x128xi32>
    %c-2073254261_i32 = arith.constant -2073254261 : i32
    %32 = vector.broadcast %c-2073254261_i32 : i32 to vector<128x128xi32>
    %33 = arith.muli %31, %32 : vector<128x128xi32>
    %c16_i32_7 = arith.constant 16 : i32
    %34 = vector.broadcast %c16_i32_7 : i32 to vector<128x128xi32>
    %35 = arith.shrui %33, %34 : vector<128x128xi32>
    %36 = arith.xori %33, %35 : vector<128x128xi32>
    %c8_i32 = arith.constant 8 : i32
    %37 = vector.broadcast %c8_i32 : i32 to vector<128x128xi32>
    %38 = arith.shrui %36, %37 : vector<128x128xi32>
    %c1677722_i32 = arith.constant 1677722 : i32
    %39 = vector.broadcast %c1677722_i32 : i32 to vector<128x128xi32>
    %40 = arith.cmpi sge, %38, %39 : vector<128x128xi32>
    %cst_8 = arith.constant 1.11111116 : f32
    %41 = vector.broadcast %cst_8 : f32 to vector<128x128xf32>
    %42 = arith.mulf %10, %41 : vector<128x128xf32>
    %cst_9 = arith.constant 0.000000e+00 : f32
    %43 = vector.broadcast %cst_9 : f32 to vector<128x128xf32>
    %44 = arith.select %40, %42, %43 : vector<128x128xi1>, vector<128x128xf32>
    %45 = arith.truncf %44 : vector<128x128xf32> to vector<128x128xbf16>
    %c0_10 = arith.constant 0 : index
    %c0_11 = arith.constant 0 : index
    %46 = vector.load %arg5[%c0_10, %c0_11] : memref<128x128xbf16, #tpu.memory_space<vmem>>, vector<128x128xbf16>
    %cst_12 = arith.constant dense<0.000000e+00> : vector<128x128xf32>
    %47 = tpu.matmul %45, %46, %cst_12 {dimension_numbers = #tpu.dot_dimension_numbers<[1], [0], [0], [1], [0, 0, 1, 1], [], []>} : vector<128x128xbf16>, vector<128x128xbf16>, vector<128x128xf32> -> vector<128x128xf32>
    %c0_13 = arith.constant 0 : index
    %c0_14 = arith.constant 0 : index
    %48 = vector.load %arg6[%c0_13, %c0_14] : memref<1x128xf32, #tpu.memory_space<vmem>>, vector<1x128xf32>
    %49 = vector.broadcast %48 : vector<1x128xf32> to vector<128x128xf32>
    %50 = arith.addf %47, %49 : vector<128x128xf32>
    %cst_15 = arith.constant 0.000000e+00 : f32
    %51 = vector.broadcast %cst_15 : f32 to vector<128x128xf32>
    %52 = arith.maximumf %50, %51 : vector<128x128xf32>
    %53 = tpu.iota {dimensions = array<i32: 0>} : vector<128x128xi32>
    %54 = vector.broadcast %1 : i32 to vector<128x128xi32>
    %55 = arith.addi %53, %54 : vector<128x128xi32>
    %56 = tpu.iota {dimensions = array<i32: 1>} : vector<128x128xi32>
    %c-1640531535_i32_16 = arith.constant -1640531535 : i32
    %57 = vector.broadcast %c-1640531535_i32_16 : i32 to vector<128x128xi32>
    %58 = arith.muli %55, %57 : vector<128x128xi32>
    %c-2048144777_i32_17 = arith.constant -2048144777 : i32
    %59 = vector.broadcast %c-2048144777_i32_17 : i32 to vector<128x128xi32>
    %60 = arith.muli %56, %59 : vector<128x128xi32>
    %61 = arith.xori %58, %60 : vector<128x128xi32>
    %c-1028477379_i32_18 = arith.constant -1028477379 : i32
    %62 = arith.muli %0, %c-1028477379_i32_18 : i32
    %c2_i32 = arith.constant 2 : i32
    %63 = arith.addi %62, %c2_i32 : i32
    %64 = vector.broadcast %63 : i32 to vector<128x128xi32>
    %65 = arith.xori %61, %64 : vector<128x128xi32>
    %c16_i32_19 = arith.constant 16 : i32
    %66 = vector.broadcast %c16_i32_19 : i32 to vector<128x128xi32>
    %67 = arith.shrui %65, %66 : vector<128x128xi32>
    %68 = arith.xori %65, %67 : vector<128x128xi32>
    %c2146121005_i32_20 = arith.constant 2146121005 : i32
    %69 = vector.broadcast %c2146121005_i32_20 : i32 to vector<128x128xi32>
    %70 = arith.muli %68, %69 : vector<128x128xi32>
    %c15_i32_21 = arith.constant 15 : i32
    %71 = vector.broadcast %c15_i32_21 : i32 to vector<128x128xi32>
    %72 = arith.shrui %70, %71 : vector<128x128xi32>
    %73 = arith.xori %70, %72 : vector<128x128xi32>
    %c-2073254261_i32_22 = arith.constant -2073254261 : i32
    %74 = vector.broadcast %c-2073254261_i32_22 : i32 to vector<128x128xi32>
    %75 = arith.muli %73, %74 : vector<128x128xi32>
    %c16_i32_23 = arith.constant 16 : i32
    %76 = vector.broadcast %c16_i32_23 : i32 to vector<128x128xi32>
    %77 = arith.shrui %75, %76 : vector<128x128xi32>
    %78 = arith.xori %75, %77 : vector<128x128xi32>
    %c8_i32_24 = arith.constant 8 : i32
    %79 = vector.broadcast %c8_i32_24 : i32 to vector<128x128xi32>
    %80 = arith.shrui %78, %79 : vector<128x128xi32>
    %c3355443_i32 = arith.constant 3355443 : i32
    %81 = vector.broadcast %c3355443_i32 : i32 to vector<128x128xi32>
    %82 = arith.cmpi sge, %80, %81 : vector<128x128xi32>
    %cst_25 = arith.constant 1.250000e+00 : f32
    %83 = vector.broadcast %cst_25 : f32 to vector<128x128xf32>
    %84 = arith.mulf %52, %83 : vector<128x128xf32>
    %cst_26 = arith.constant 0.000000e+00 : f32
    %85 = vector.broadcast %cst_26 : f32 to vector<128x128xf32>
    %86 = arith.select %82, %84, %85 : vector<128x128xi1>, vector<128x128xf32>
    %87 = arith.truncf %86 : vector<128x128xf32> to vector<128x128xbf16>
    %c0_27 = arith.constant 0 : index
    %c0_28 = arith.constant 0 : index
    %88 = vector.load %arg7[%c0_27, %c0_28] : memref<128x128xbf16, #tpu.memory_space<vmem>>, vector<128x128xbf16>
    %cst_29 = arith.constant dense<0.000000e+00> : vector<128x128xf32>
    %89 = tpu.matmul %87, %88, %cst_29 {dimension_numbers = #tpu.dot_dimension_numbers<[1], [0], [0], [1], [0, 0, 1, 1], [], []>} : vector<128x128xbf16>, vector<128x128xbf16>, vector<128x128xf32> -> vector<128x128xf32>
    %c0_30 = arith.constant 0 : index
    %c0_31 = arith.constant 0 : index
    %90 = vector.load %arg8[%c0_30, %c0_31] : memref<1x128xf32, #tpu.memory_space<vmem>>, vector<1x128xf32>
    %91 = vector.broadcast %90 : vector<1x128xf32> to vector<128x128xf32>
    %92 = arith.addf %89, %91 : vector<128x128xf32>
    %93 = tpu.iota {dimensions = array<i32: 1>} : vector<128x128xi32>
    %c4_i32 = arith.constant 4 : i32
    %94 = vector.broadcast %c4_i32 : i32 to vector<128x128xi32>
    %95 = arith.cmpi slt, %93, %94 : vector<128x128xi32>
    %cst_32 = arith.constant -1.000000e+30 : f32
    %96 = vector.broadcast %cst_32 : f32 to vector<128x128xf32>
    %97 = arith.select %95, %92, %96 : vector<128x128xi1>, vector<128x128xf32>
    %cst_33 = arith.constant dense<0xFF800000> : vector<128xf32>
    %98 = vector.multi_reduction <maximumf>, %97, %cst_33 [1] : vector<128x128xf32> to vector<128xf32>
    %99 = vector.shape_cast %98 : vector<128xf32> to vector<128x1xf32>
    %100 = vector.broadcast %99 : vector<128x1xf32> to vector<128x128xf32>
    %101 = arith.subf %97, %100 : vector<128x128xf32>
    %102 = math.exp %101 : vector<128x128xf32>
    %cst_34 = arith.constant dense<0.000000e+00> : vector<128xf32>
    %103 = vector.multi_reduction <add>, %102, %cst_34 [1] : vector<128x128xf32> to vector<128xf32>
    %104 = vector.shape_cast %103 : vector<128xf32> to vector<128x1xf32>
    %105 = vector.broadcast %104 : vector<128x1xf32> to vector<128x128xf32>
    %106 = arith.divf %102, %105 : vector<128x128xf32>
    %c0_35 = arith.constant 0 : index
    %c0_36 = arith.constant 0 : index
    %107 = vector.load %arg9[%c0_35, %c0_36] : memref<128x128xf32, #tpu.memory_space<vmem>>, vector<128x128xf32>
    tpu.vector_store %arg9[%c0_35, %c0_36], %106 {strides = array<i32>} : memref<128x128xf32, #tpu.memory_space<vmem>>, vector<128x128xf32>,
    return
  }
  func.func @transform_0(%arg0: i32, %arg1: memref<1xi32, #tpu.memory_space<smem>>) -> (i32, i32) {
    %c0_i32 = arith.constant 0 : i32
    %c0_i32_0 = arith.constant 0 : i32
    return %arg0, %c0_i32 : i32, i32
  }
  func.func @transform_1(%arg0: i32, %arg1: memref<1xi32, #tpu.memory_space<smem>>) -> (i32, i32) {
    %c0_i32 = arith.constant 0 : i32
    %c0_i32_0 = arith.constant 0 : i32
    %c0_i32_1 = arith.constant 0 : i32
    return %c0_i32, %c0_i32_0 : i32, i32
  }
  func.func @transform_2(%arg0: i32, %arg1: memref<1xi32, #tpu.memory_space<smem>>) -> (i32, i32) {
    %c0_i32 = arith.constant 0 : i32
    %c0_i32_0 = arith.constant 0 : i32
    %c0_i32_1 = arith.constant 0 : i32
    return %c0_i32, %c0_i32_0 : i32, i32
  }
  func.func @transform_3(%arg0: i32, %arg1: memref<1xi32, #tpu.memory_space<smem>>) -> (i32, i32) {
    %c0_i32 = arith.constant 0 : i32
    %c0_i32_0 = arith.constant 0 : i32
    %c0_i32_1 = arith.constant 0 : i32
    return %c0_i32, %c0_i32_0 : i32, i32
  }
  func.func @transform_4(%arg0: i32, %arg1: memref<1xi32, #tpu.memory_space<smem>>) -> (i32, i32) {
    %c0_i32 = arith.constant 0 : i32
    %c0_i32_0 = arith.constant 0 : i32
    %c0_i32_1 = arith.constant 0 : i32
    return %c0_i32, %c0_i32_0 : i32, i32
  }
  func.func @transform_5(%arg0: i32, %arg1: memref<1xi32, #tpu.memory_space<smem>>) -> (i32, i32) {
    %c0_i32 = arith.constant 0 : i32
    %c0_i32_0 = arith.constant 0 : i32
    %c0_i32_1 = arith.constant 0 : i32
    return %c0_i32, %c0_i32_0 : i32, i32
  }
  func.func @transform_6(%arg0: i32, %arg1: memref<1xi32, #tpu.memory_space<smem>>) -> (i32, i32) {
    %c0_i32 = arith.constant 0 : i32
    %c0_i32_0 = arith.constant 0 : i32
    %c0_i32_1 = arith.constant 0 : i32
    return %c0_i32, %c0_i32_0 : i32, i32
  }
  func.func @transform_7(%arg0: i32, %arg1: memref<1xi32, #tpu.memory_space<smem>>) -> (i32, i32) {
    %c0_i32 = arith.constant 0 : i32
    %c0_i32_0 = arith.constant 0 : i32
    return %arg0, %c0_i32 : i32, i32
  }
}

</mosaic_0001>

<llo_original>
// kernel: tpu_custom_call.1
$region0: #{tpu_custom_call.1}
  #allocation0 [shape = 'u32[]', space=smem, size = 0x4, offset = 0x4, fixed_abs, tag = 'smem constant byte address 0x4 - core index']
  #allocation1 [shape = 'u32[144,128]{1,0:T(1,128)}', space=vmem, size = 0x12000, scoped, tag = 'internal scratch']
  #allocation2 [shape = 's32[1]{0}', space=sflag, size = 0x4, scoped, tag = 'scoped memory for tpu_custom_call.1']
  #allocation3 [shape = 's32[1]{0:T(128)S(6)}', space=smem, size = 0x200, scoped, tag = 'prefetched SMEM operand 0']
  %s0 = inlined_call_operand.<no memory space> [shape: s32[1], index: 0, kind: input, shape index: {}]
  %s1 = inlined_call_operand.hbm [shape: f32[256,128], index: 1, kind: input, shape index: {}]
  %s2 = inlined_call_operand.hbm [shape: bf16[128,128], index: 2, kind: input, shape index: {}]
  %s3 = inlined_call_operand.vmem [shape: f32[1,128], index: 3, kind: input, shape index: {}]
  %s4 = inlined_call_operand.hbm [shape: bf16[128,128], index: 4, kind: input, shape index: {}]
  %s5 = inlined_call_operand.vmem [shape: f32[1,128], index: 5, kind: input, shape index: {}]
  %s6 = inlined_call_operand.hbm [shape: bf16[128,128], index: 6, kind: input, shape index: {}]
  %s7 = inlined_call_operand.vmem [shape: f32[1,128], index: 7, kind: input, shape index: {}]
  %s8 = inlined_call_operand.hbm [shape: f32[256,128], index: 8, kind: output, shape index: {}]
  %s9 = sld [smem:[#allocation0]]
  $region77: #{tpu_custom_call.1} parent=0
    _
  %s11 = ssub.s32 1, %s9
  %s12 = scalar_select 0, %s11, %s9
  %13 = sst [smem:[#allocation3]] %s0
  $region1: #{tpu_custom_call.1} parent=0
    #allocation4 [shape = 'u8[131072]{0}', space=vmem, size = 0x20000, scoped, tag = 'input window, operand 1']
    #allocation5 [shape = 's32[2]{0}', space=sflag, size = 0x8, scoped, tag = 'scoped memory for tpu_custom_call.1']
    #allocation6 [shape = 's32[2]{0}', space=sflag, size = 0x8, scoped, tag = 'scoped memory for tpu_custom_call.1']
    #allocation7 [shape = 'u8[32768]{0}', space=vmem, size = 0x8000, scoped, tag = 'input window, operand 2, single buffered']
    #allocation8 [shape = 's32[1]{0}', space=sflag, size = 0x4, scoped, tag = 'scoped memory for tpu_custom_call.1']
    #allocation9 [shape = 'u8[32768]{0}', space=vmem, size = 0x8000, scoped, tag = 'input window, operand 4, single buffered']
    #allocation10 [shape = 'u8[32768]{0}', space=vmem, size = 0x8000, scoped, tag = 'input window, operand 6, single buffered']
    #allocation11 [shape = 's32[1]{0}', space=sflag, size = 0x4, scoped, tag = 'scoped memory for tpu_custom_call.1']
    #allocation12 [shape = 'u8[131072]{0}', space=vmem, size = 0x20000, scoped, tag = 'output window, operand 0']
    %14 = vsyncpa [#allocation5], 0
    %s15 = scalar_lea.sflag [#allocation5], 1
    %16 = vsyncpa %s15, 0
    %17 = vsyncpa [#allocation8], 0
    %18 = vsyncpa [#allocation11], 0
    %19 = vsyncpa [#allocation6], 0
    %s20 = scalar_lea.sflag [#allocation6], 1
    %21 = vsyncpa %s20, 0
    loop: start=0, step=1, limit=4
    $region2: #{tpu_custom_call.1} parent=1 // loop_pre_header
      _
    $region3: #{tpu_custom_call.1} parent=1 // loop_header
      %s23 = sphi 0, %s27
      %p24 = scmp.ge.s32.totalorder %s23, 4
      %s33 = sphi 0, %s35
      %s36 = sphi 0, %s33
      %s37 = sphi 0, %s36
      %s53 = sphi 0, %s37
      %s57 = sphi 0, %s57
      %s59 = sphi 0, %s57
      %s60 = sphi 0, %s59
      %s74 = sphi 0, %s60
      %s78 = sphi 0, %s78
      %s80 = sphi 0, %s78
      %s81 = sphi 0, %s80
      %s95 = sphi 0, %s81
      %s99 = sphi 0, %s99
      %s101 = sphi 0, %s99
      %s102 = sphi 0, %s101
      %s116 = sphi 0, %s102
      %s120 = sphi 0, %s120
      %s122 = sphi 0, %s120
      %s123 = sphi 0, %s122
      %s137 = sphi 0, %s123
      %s141 = sphi 0, %s141
      %s143 = sphi 0, %s141
      %s144 = sphi 0, %s143
      %s158 = sphi 0, %s144
      %s162 = sphi 0, %s162
      %s164 = sphi 0, %s162
      %s165 = sphi 0, %s164
      %s179 = sphi 0, %s165
      %s185 = sphi 0, %s187
      %s188 = sphi 0, %s185
      %s189 = sphi 0, %s188
      %s205 = sphi 0, %s189
    $region4: #{tpu_custom_call.1} parent=1 // loop_header_branch
      %26 = sbr.rel (%p24) target = $region8
    $region5: #{tpu_custom_call.1} parent=1 // loop_body
      %s28 = ssub.s32 %s23, 1
      %s29 = ssub.s32 %s23, 2
      %s30 = sadd.s32 %s23, 1
      %s31 = ssub.s32 %s23, %s30
      %p32 = scmp.eq.s32.totalorder %s31, 0
      %s34 = sadd.s32 %s33, 1
      %s35 = scalar_select %p32, %s33, %s34
      %p38 = pneg %p32
      %p39 = scmp.eq.s32.totalorder %s23, 1
      %p40 = por %p38, %p39
      %p41 = scmp.ne.s32.totalorder %s33, %s36
      %p42 = scmp.eq.s32.totalorder %s23, 0
      %p43 = por %p41, %p42
      %p44 = scmp.ne.s32.totalorder %s33, %s36
      %p45 = scmp.eq.s32.totalorder %s28, 1
      %p46 = por %p44, %p45
      %p47 = scmp.ne.s32.totalorder %s36, %s37
      %p48 = scmp.eq.s32.totalorder %s28, 0
      %p49 = por %p47, %p48
      %p50 = scmp.ne.s32.totalorder %s36, %s37
      %p51 = scmp.eq.s32.totalorder %s29, 1
      %p52 = por %p50, %p51
      %p54 = scmp.ne.s32.totalorder %s37, %s53
      %p55 = scmp.eq.s32.totalorder %s29, 0
      %p56 = por %p54, %p55
      %s58 = sadd.s32 %s57, 1
      %p61 = scmp.eq.s32.totalorder %s23, 1
      %p62 = scmp.ne.s32.totalorder %s57, %s59
      %p63 = scmp.eq.s32.totalorder %s23, 0
      %p64 = por %p62, %p63
      %p65 = scmp.ne.s32.totalorder %s57, %s59
      %p66 = scmp.eq.s32.totalorder %s28, 1
      %p67 = por %p65, %p66
      %p68 = scmp.ne.s32.totalorder %s59, %s60
      %p69 = scmp.eq.s32.totalorder %s28, 0
      %p70 = por %p68, %p69
      %p71 = scmp.ne.s32.totalorder %s59, %s60
      %p72 = scmp.eq.s32.totalorder %s29, 1
      %p73 = por %p71, %p72
      %p75 = scmp.ne.s32.totalorder %s60, %s74
      %p76 = scmp.eq.s32.totalorder %s29, 0
      %p77 = por %p75, %p76
      %s79 = sadd.s32 %s78, 1
      %p82 = scmp.eq.s32.totalorder %s23, 1
      %p83 = scmp.ne.s32.totalorder %s78, %s80
      %p84 = scmp.eq.s32.totalorder %s23, 0
      %p85 = por %p83, %p84
      %p86 = scmp.ne.s32.totalorder %s78, %s80
      %p87 = scmp.eq.s32.totalorder %s28, 1
      %p88 = por %p86, %p87
      %p89 = scmp.ne.s32.totalorder %s80, %s81
      %p90 = scmp.eq.s32.totalorder %s28, 0
      %p91 = por %p89, %p90
      %p92 = scmp.ne.s32.totalorder %s80, %s81
      %p93 = scmp.eq.s32.totalorder %s29, 1
      %p94 = por %p92, %p93
      %p96 = scmp.ne.s32.totalorder %s81, %s95
      %p97 = scmp.eq.s32.totalorder %s29, 0
      %p98 = por %p96, %p97
      %s100 = sadd.s32 %s99, 1
      %p103 = scmp.eq.s32.totalorder %s23, 1
      %p104 = scmp.ne.s32.totalorder %s99, %s101
      %p105 = scmp.eq.s32.totalorder %s23, 0
      %p106 = por %p104, %p105
      %p107 = scmp.ne.s32.totalorder %s99, %s101
      %p108 = scmp.eq.s32.totalorder %s28, 1
      %p109 = por %p107, %p108
      %p110 = scmp.ne.s32.totalorder %s101, %s102
      %p111 = scmp.eq.s32.totalorder %s28, 0
      %p112 = por %p110, %p111
      %p113 = scmp.ne.s32.totalorder %s101, %s102
      %p114 = scmp.eq.s32.totalorder %s29, 1
      %p115 = por %p113, %p114
      %p117 = scmp.ne.s32.totalorder %s102, %s116
      %p118 = scmp.eq.s32.totalorder %s29, 0
      %p119 = por %p117, %p118
      %s121 = sadd.s32 %s120, 1
      %p124 = scmp.eq.s32.totalorder %s23, 1
      %p125 = scmp.ne.s32.totalorder %s120, %s122
      %p126 = scmp.eq.s32.totalorder %s23, 0
      %p127 = por %p125, %p126
      %p128 = scmp.ne.s32.totalorder %s120, %s122
      %p129 = scmp.eq.s32.totalorder %s28, 1
      %p130 = por %p128, %p129
      %p131 = scmp.ne.s32.totalorder %s122, %s123
      %p132 = scmp.eq.s32.totalorder %s28, 0
      %p133 = por %p131, %p132
      %p134 = scmp.ne.s32.totalorder %s122, %s123
      %p135 = scmp.eq.s32.totalorder %s29, 1
      %p136 = por %p134, %p135
      %p138 = scmp.ne.s32.totalorder %s123, %s137
      %p139 = scmp.eq.s32.totalorder %s29, 0
      %p140 = por %p138, %p139
      %s142 = sadd.s32 %s141, 1
      %p145 = scmp.eq.s32.totalorder %s23, 1
      %p146 = scmp.ne.s32.totalorder %s141, %s143
      %p147 = scmp.eq.s32.totalorder %s23, 0
      %p148 = por %p146, %p147
      %p149 = scmp.ne.s32.totalorder %s141, %s143
      %p150 = scmp.eq.s32.totalorder %s28, 1
      %p151 = por %p149, %p150
      %p152 = scmp.ne.s32.totalorder %s143, %s144
      %p153 = scmp.eq.s32.totalorder %s28, 0
      %p154 = por %p152, %p153
      %p155 = scmp.ne.s32.totalorder %s143, %s144
      %p156 = scmp.eq.s32.totalorder %s29, 1
      %p157 = por %p155, %p156
      %p159 = scmp.ne.s32.totalorder %s144, %s158
      %p160 = scmp.eq.s32.totalorder %s29, 0
      %p161 = por %p159, %p160
      %s163 = sadd.s32 %s162, 1
      %p166 = scmp.eq.s32.totalorder %s23, 1
      %p167 = scmp.ne.s32.totalorder %s162, %s164
      %p168 = scmp.eq.s32.totalorder %s23, 0
      %p169 = por %p167, %p168
      %p170 = scmp.ne.s32.totalorder %s162, %s164
      %p171 = scmp.eq.s32.totalorder %s28, 1
      %p172 = por %p170, %p171
      %p173 = scmp.ne.s32.totalorder %s164, %s165
      %p174 = scmp.eq.s32.totalorder %s28, 0
      %p175 = por %p173, %p174
      %p176 = scmp.ne.s32.totalorder %s164, %s165
      %p177 = scmp.eq.s32.totalorder %s29, 1
      %p178 = por %p176, %p177
      %p180 = scmp.ne.s32.totalorder %s165, %s179
      %p181 = scmp.eq.s32.totalorder %s29, 0
      %p182 = por %p180, %p181
      %s183 = ssub.s32 %s23, %s30
      %p184 = scmp.eq.s32.totalorder %s183, 0
      %s186 = sadd.s32 %s185, 1
      %s187 = scalar_select %p184, %s185, %s186
      %p190 = pneg %p184
      %p191 = scmp.eq.s32.totalorder %s23, 1
      %p192 = por %p190, %p191
      %p193 = scmp.ne.s32.totalorder %s185, %s188
      %p194 = scmp.eq.s32.totalorder %s23, 0
      %p195 = por %p193, %p194
      %p196 = scmp.ne.s32.totalorder %s185, %s188
      %p197 = scmp.eq.s32.totalorder %s28, 1
      %p198 = por %p196, %p197
      %p199 = scmp.ne.s32.totalorder %s188, %s189
      %p200 = scmp.eq.s32.totalorder %s28, 0
      %p201 = por %p199, %p200
      %p202 = scmp.ne.s32.totalorder %s188, %s189
      %p203 = scmp.eq.s32.totalorder %s29, 1
      %p204 = por %p202, %p203
      %p206 = scmp.ne.s32.totalorder %s189, %s205
      %p207 = scmp.eq.s32.totalorder %s29, 0
      %p208 = por %p206, %p207
      %p209 = scmp.le.s32.totalorder 1, %s23
      %p210 = scmp.lt.s32.totalorder %s23, 3
      %p211 = pnand %p209, %p210
      %p212 = pneg %p211
      // Predicated region
      $region9: #{tpu_custom_call.1} parent=5 // pred_check
        _
      $region10: #{tpu_custom_call.1} parent=5 // pred_check_branch
        %214 = sbr.rel (%p211) target = $region12
      $region11: #{tpu_custom_call.1} parent=5 // pred_region
        %s215 = ssub.s32 %s23, 1
        // Predicated region
        $region13: #{tpu_custom_call.1} parent=11 // pred_check
          %p216 = pneg %p70
        $region14: #{tpu_custom_call.1} parent=11 // pred_check_branch
          %218 = sbr.rel (%p216) target = $region16
        $region15: #{tpu_custom_call.1} parent=11 // pred_region
          %s220 = ssub.s32 1024, 1024
          %221 = vsyncadd [#allocation8], %s220
          %s222 = sshll.u32 [#allocation7], 4
          %s223 = int_to_ptr.vmem [resolvable:$true] %s222
          %228 = dma.hbm_to_vmem [thread:$0]  %s2, 1024, %s223, [#allocation8], 64, 64, 4
        $region16: #{tpu_custom_call.1} parent=11 // pred_fallthru
          _
        // Predicated region
        $region17: #{tpu_custom_call.1} parent=11 // pred_check
          %p229 = pneg %p91
        $region18: #{tpu_custom_call.1} parent=11 // pred_check_branch
          %231 = sbr.rel (%p229) target = $region20
        $region19: #{tpu_custom_call.1} parent=11 // pred_region
          _
        $region20: #{tpu_custom_call.1} parent=11 // pred_fallthru
          _
        // Predicated region
        $region21: #{tpu_custom_call.1} parent=11 // pred_check
          %p232 = pneg %p112
        $region22: #{tpu_custom_call.1} parent=11 // pred_check_branch
          %234 = sbr.rel (%p232) target = $region24
        $region23: #{tpu_custom_call.1} parent=11 // pred_region
          %s236 = ssub.s32 1024, 1024
          %237 = vsyncadd [#allocation8], %s236
          %s238 = sshll.u32 [#allocation9], 4
          %s239 = int_to_ptr.vmem [resolvable:$true] %s238
          %244 = dma.hbm_to_vmem [thread:$0]  %s4, 1024, %s239, [#allocation8], 64, 64, 4
        $region24: #{tpu_custom_call.1} parent=11 // pred_fallthru
          _
        // Predicated region
        $region25: #{tpu_custom_call.1} parent=11 // pred_check
          %p245 = pneg %p133
        $region26: #{tpu_custom_call.1} parent=11 // pred_check_branch
          %247 = sbr.rel (%p245) target = $region28
        $region27: #{tpu_custom_call.1} parent=11 // pred_region
          _
        $region28: #{tpu_custom_call.1} parent=11 // pred_fallthru
          _
        // Predicated region
        $region29: #{tpu_custom_call.1} parent=11 // pred_check
          %p248 = pneg %p154
        $region30: #{tpu_custom_call.1} parent=11 // pred_check_branch
          %250 = sbr.rel (%p248) target = $region32
        $region31: #{tpu_custom_call.1} parent=11 // pred_region
          %s252 = ssub.s32 1024, 1024
          %253 = vsyncadd [#allocation11], %s252
          %s254 = sshll.u32 [#allocation10], 4
          %s255 = int_to_ptr.vmem [resolvable:$true] %s254
          %260 = dma.hbm_to_vmem [thread:$0]  %s6, 1024, %s255, [#allocation11], 64, 64, 4
        $region32: #{tpu_custom_call.1} parent=11 // pred_fallthru
          _
        // Predicated region
        $region33: #{tpu_custom_call.1} parent=11 // pred_check
          %p261 = pneg %p175
        $region34: #{tpu_custom_call.1} parent=11 // pred_check_branch
          %263 = sbr.rel (%p261) target = $region36
        $region35: #{tpu_custom_call.1} parent=11 // pred_region
          _
        $region36: #{tpu_custom_call.1} parent=11 // pred_fallthru
          _
      $region12: #{tpu_custom_call.1} parent=5 // pred_fallthru
        _
      %p264 = scmp.lt.s32.totalorder %s23, 2
      // Predicated region
      $region37: #{tpu_custom_call.1} parent=5 // pred_check
        %p265 = pneg %p264
      $region38: #{tpu_custom_call.1} parent=5 // pred_check_branch
        %267 = sbr.rel (%p265) target = $region40
      $region39: #{tpu_custom_call.1} parent=5 // pred_region
        // Predicated region
        $region41: #{tpu_custom_call.1} parent=39 // pred_check
          %p268 = pneg %p43
        $region42: #{tpu_custom_call.1} parent=39 // pred_check_branch
          %270 = sbr.rel (%p268) target = $region44
        $region43: #{tpu_custom_call.1} parent=39 // pred_region
          %s271 = sand.u32 %s33, 1
          %s272 = scalar_lea.sflag [#allocation5], %s271
          %s273 = sand.u32 %s33, 1
          %s274 = smul.addr %s273, 128
          %s275 = scalar_lea.vmem [#allocation4], %s274
          %s276 = smul.u32 16, %s23
          %s278 = ssub.s32 2048, 2048
          %279 = vsyncadd %s272, %s278
          %s280 = smul.addr %s276, 128
          %s281 = scalar_lea.hbm %s1, %s280
          %s282 = sshll.u32 %s275, 4
          %s283 = int_to_ptr.vmem [resolvable:$true] %s282
          %288 = dma.hbm_to_vmem [thread:$0]  %s281, 2048, %s283, %s272, 128, 128, 8
        $region44: #{tpu_custom_call.1} parent=39 // pred_fallthru
          _
      $region40: #{tpu_custom_call.1} parent=5 // pred_fallthru
        _
      %p289 = scmp.le.s32.totalorder 1, %s23
      %p290 = scmp.lt.s32.totalorder %s23, 3
      %p291 = pnand %p289, %p290
      %p292 = pneg %p291
      // Predicated region
      $region45: #{tpu_custom_call.1} parent=5 // pred_check
        _
      $region46: #{tpu_custom_call.1} parent=5 // pred_check_branch
        %294 = sbr.rel (%p291) target = $region48
      $region47: #{tpu_custom_call.1} parent=5 // pred_region
        %s295 = ssub.s32 %s23, 1
        %s296 = sand.u32 %s36, 1
        %s297 = scalar_lea.sflag [#allocation5], %s296
        %s298 = sand.u32 %s36, 1
        %s299 = smul.addr %s298, 128
        %s300 = scalar_lea.vmem [#allocation4], %s299
        // Predicated region
        $region49: #{tpu_custom_call.1} parent=47 // pred_check
          %p301 = pneg %p49
        $region50: #{tpu_custom_call.1} parent=47 // pred_check_branch
          %303 = sbr.rel (%p301) target = $region52
        $region51: #{tpu_custom_call.1} parent=47 // pred_region
          %304 = dma.done %s297, 2048
        $region52: #{tpu_custom_call.1} parent=47 // pred_fallthru
          _
        // Predicated region
        $region53: #{tpu_custom_call.1} parent=47 // pred_check
          %p305 = pneg %p70
        $region54: #{tpu_custom_call.1} parent=47 // pred_check_branch
          %307 = sbr.rel (%p305) target = $region56
        $region55: #{tpu_custom_call.1} parent=47 // pred_region
          %308 = dma.done [#allocation8], 1024
        $region56: #{tpu_custom_call.1} parent=47 // pred_fallthru
          _
        // Predicated region
        $region57: #{tpu_custom_call.1} parent=47 // pred_check
          %p309 = pneg %p112
        $region58: #{tpu_custom_call.1} parent=47 // pred_check_branch
          %311 = sbr.rel (%p309) target = $region60
        $region59: #{tpu_custom_call.1} parent=47 // pred_region
          %312 = dma.done [#allocation8], 1024
        $region60: #{tpu_custom_call.1} parent=47 // pred_fallthru
          _
        // Predicated region
        $region61: #{tpu_custom_call.1} parent=47 // pred_check
          %p313 = pneg %p154
        $region62: #{tpu_custom_call.1} parent=47 // pred_check_branch
          %315 = sbr.rel (%p313) target = $region64
        $region63: #{tpu_custom_call.1} parent=47 // pred_region
          %316 = dma.done [#allocation11], 1024
        $region64: #{tpu_custom_call.1} parent=47 // pred_fallthru
          _
        %s317 = sand.u32 %s36, 1
        %s318 = scalar_lea.sflag [#allocation5], %s317
        %s319 = sand.u32 %s36, 1
        %s320 = smul.addr %s319, 128
        %s321 = scalar_lea.vmem [#allocation4], %s320
        %p322 = pneg %p49
        %p323 = pneg %p46
        %p324 = pneg %p70
        %p325 = pneg %p67
        %p326 = pneg %p91
        %p327 = pneg %p88
        %p328 = pneg %p112
        %p329 = pneg %p109
        %p330 = pneg %p133
        %p331 = pneg %p130
        %p332 = pneg %p154
        %p333 = pneg %p151
        %p334 = pneg %p175
        %p335 = pneg %p172
        %p336 = pneg %p201
        %p337 = pneg %p198
        %s338 = sand.u32 %s188, 1
        %s339 = scalar_lea.sflag [#allocation6], %s338
        %s340 = sand.u32 %s188, 1
        %s341 = smul.addr %s340, 128
        %s342 = scalar_lea.vmem [#allocation12], %s341
        %s343 = smul.u32 16, %s28
        %s344 = smul.u32 16, %s28
        %s346 = sld [smem:[#allocation3]]
        %s347 = smul.u32 %s28, 128
        %v348 = vld [vmem:[%s300] sm:$0xff]
        %v349 = vld [vmem:[%s300 + $0x8] sm:$0xff]
        %v350 = vld [vmem:[%s300 + $0x10] sm:$0xff]
        %v351 = vld [vmem:[%s300 + $0x18] sm:$0xff]
        %v352 = vld [vmem:[%s300 + $0x20] sm:$0xff]
        %v353 = vld [vmem:[%s300 + $0x28] sm:$0xff]
        %v354 = vld [vmem:[%s300 + $0x30] sm:$0xff]
        %v355 = vld [vmem:[%s300 + $0x38] sm:$0xff]
        %v356 = vld [vmem:[%s300 + $0x40] sm:$0xff]
        %v357 = vld [vmem:[%s300 + $0x48] sm:$0xff]
        %v358 = vld [vmem:[%s300 + $0x50] sm:$0xff]
        %v359 = vld [vmem:[%s300 + $0x58] sm:$0xff]
        %v360 = vld [vmem:[%s300 + $0x60] sm:$0xff]
        %v361 = vld [vmem:[%s300 + $0x68] sm:$0xff]
        %v362 = vld [vmem:[%s300 + $0x70] sm:$0xff]
        %v363 = vld [vmem:[%s300 + $0x78] sm:$0xff]
        %v364 = vpack.c.bf16 %v349, %v348
        %v365 = vpack.c.bf16 %v351, %v350
        %v366 = vpack.c.bf16 %v353, %v352
        %v367 = vpack.c.bf16 %v355, %v354
        %v368 = vpack.c.bf16 %v357, %v356
        %v369 = vpack.c.bf16 %v359, %v358
        %v370 = vpack.c.bf16 %v361, %v360
        %v371 = vpack.c.bf16 %v363, %v362
        %v372 = vld [vmem:[#allocation7] sm:$0xf]
        %v373 = vld [vmem:[#allocation7 + $0x4] sm:$0xf]
        %v374 = vld [vmem:[#allocation7 + $0x8] sm:$0xf]
        %v375 = vld [vmem:[#allocation7 + $0xc] sm:$0xf]
        %v376 = vld [vmem:[#allocation7 + $0x10] sm:$0xf]
        %v377 = vld [vmem:[#allocation7 + $0x14] sm:$0xf]
        %v378 = vld [vmem:[#allocation7 + $0x18] sm:$0xf]
        %v379 = vld [vmem:[#allocation7 + $0x1c] sm:$0xf]
        %v380 = vld [vmem:[#allocation7 + $0x20] sm:$0xf]
        %v381 = vld [vmem:[#allocation7 + $0x24] sm:$0xf]
        %v382 = vld [vmem:[#allocation7 + $0x28] sm:$0xf]
        %v383 = vld [vmem:[#allocation7 + $0x2c] sm:$0xf]
        %v384 = vld [vmem:[#allocation7 + $0x30] sm:$0xf]
        %v385 = vld [vmem:[#allocation7 + $0x34] sm:$0xf]
        %v386 = vld [vmem:[#allocation7 + $0x38] sm:$0xf]
        %v387 = vld [vmem:[#allocation7 + $0x3c] sm:$0xf]
        %v388 = vld [vmem:[%s3] sm:$0x1]
        %v390 = vlaneseq
        %v391 = vshrl.u32 %v390, 7
        %v392 = vsub.s32 0, %v391
        %v393 = vrot.slane %v388, %v392
        %v411 = vunpack.c.l.b16 %v372
        %v412 = vunpack.c.l.b16 %v373
        %v413 = vunpack.c.l.b16 %v374
        %v414 = vunpack.c.l.b16 %v375
        %v415 = vunpack.c.l.b16 %v376
        %v416 = vunpack.c.l.b16 %v377
        %v417 = vunpack.c.l.b16 %v378
        %v418 = vunpack.c.l.b16 %v379
        %v419 = vunpack.c.l.b16 %v380
        %v420 = vunpack.c.l.b16 %v381
        %v421 = vunpack.c.l.b16 %v382
        %v422 = vunpack.c.l.b16 %v383
        %v423 = vunpack.c.l.b16 %v384
        %v424 = vunpack.c.l.b16 %v385
        %v425 = vunpack.c.l.b16 %v386
        %v426 = vunpack.c.l.b16 %v387
        %v427 = vpack.c.b16 %v412, %v411
        %v428 = vpack.c.b16 %v414, %v413
        %v429 = vpack.c.b16 %v416, %v415
        %v430 = vpack.c.b16 %v418, %v417
        %v431 = vpack.c.b16 %v420, %v419
        %v432 = vpack.c.b16 %v422, %v421
        %v433 = vpack.c.b16 %v424, %v423
        %v434 = vpack.c.b16 %v426, %v425
        %443 = vmatprep.subr.bf16.mxu0 0
        %444 = vmatpush1.bf16.msra.mxu0 %v434
        %445 = vmatprep.subr.bf16.mxu0 0
        %446 = vmatpush1.bf16.msra.mxu0 %v433
        %447 = vmatprep.subr.bf16.mxu0 0
        %448 = vmatpush1.bf16.msra.mxu0 %v432
        %449 = vmatprep.subr.bf16.mxu0 0
        %450 = vmatpush1.bf16.msra.mxu0 %v431
        %451 = vmatprep.subr.bf16.mxu0 0
        %452 = vmatpush1.bf16.msra.mxu0 %v430
        %453 = vmatprep.subr.bf16.mxu0 0
        %454 = vmatpush1.bf16.msra.mxu0 %v429
        %455 = vmatprep.subr.bf16.mxu0 0
        %456 = vmatpush1.bf16.msra.mxu0 %v428
        %457 = vmatprep.subr.bf16.mxu0 0
        %458 = vmatpush1.bf16.msra.mxu0 %v427
        %459 = vmatprep.subr.bf16.mxu0 0
        %460 = vmatpush2.bf16.msra.mxu0 0
        %461 = vmatprep.subr.bf16.mxu0 0
        %462 = vmatpush2.bf16.msra.mxu0 0
        %463 = vmatprep.subr.bf16.mxu0 0
        %464 = vmatpush2.bf16.msra.mxu0 0
        %465 = vmatprep.subr.bf16.mxu0 0
        %466 = vmatpush2.bf16.msra.mxu0 0
        %467 = vmatprep.subr.bf16.mxu0 0
        %468 = vmatpush2.bf16.msra.mxu0 0
        %469 = vmatprep.subr.bf16.mxu0 0
        %470 = vmatpush2.bf16.msra.mxu0 0
        %471 = vmatprep.subr.bf16.mxu0 0
        %472 = vmatpush2.bf16.msra.mxu0 0
        %473 = vmatprep.subr.bf16.mxu0 0
        %474 = vmatpush2.bf16.msra.mxu0 0
        %475 = vmatprep.mubr.bf16.mxu0 0
        %476 = vmatmul.mubr.bf16.gmra.mxu0 %v364
        %v477 = vpop.f32.mrf.mxu0
        %v478 = vadd.f32 %v393, %v477
        %v479 = vpop.f32.mrf.mxu0
        %v480 = vpop.f32.mrf.mxu0
        %v481 = vadd.f32 %v393, %v480
        %v482 = vpop.f32.mrf.mxu0
        %483 = vmatprep.mubr.bf16.mxu0 0
        %484 = vmatmul.mubr.bf16.gmra.mxu0 %v365
        %v485 = vpop.f32.mrf.mxu0
        %v486 = vadd.f32 %v393, %v485
        %v487 = vpop.f32.mrf.mxu0
        %v488 = vpop.f32.mrf.mxu0
        %v489 = vadd.f32 %v393, %v488
        %v490 = vpop.f32.mrf.mxu0
        %491 = vmatprep.mubr.bf16.mxu0 0
        %492 = vmatmul.mubr.bf16.gmra.mxu0 %v366
        %v493 = vpop.f32.mrf.mxu0
        %v494 = vadd.f32 %v393, %v493
        %v495 = vpop.f32.mrf.mxu0
        %v496 = vpop.f32.mrf.mxu0
        %v497 = vadd.f32 %v393, %v496
        %v498 = vpop.f32.mrf.mxu0
        %499 = vmatprep.mubr.bf16.mxu0 0
        %500 = vmatmul.mubr.bf16.gmra.mxu0 %v367
        %v501 = vpop.f32.mrf.mxu0
        %v502 = vadd.f32 %v393, %v501
        %v503 = vpop.f32.mrf.mxu0
        %v504 = vpop.f32.mrf.mxu0
        %v505 = vadd.f32 %v393, %v504
        %v506 = vpop.f32.mrf.mxu0
        %507 = vmatprep.mubr.bf16.mxu0 0
        %508 = vmatmul.mubr.bf16.gmra.mxu0 %v368
        %v509 = vpop.f32.mrf.mxu0
        %v510 = vadd.f32 %v393, %v509
        %v511 = vpop.f32.mrf.mxu0
        %v512 = vpop.f32.mrf.mxu0
        %v513 = vadd.f32 %v393, %v512
        %v514 = vpop.f32.mrf.mxu0
        %515 = vmatprep.mubr.bf16.mxu0 0
        %516 = vmatmul.mubr.bf16.gmra.mxu0 %v369
        %v517 = vpop.f32.mrf.mxu0
        %v518 = vadd.f32 %v393, %v517
        %v519 = vpop.f32.mrf.mxu0
        %v520 = vpop.f32.mrf.mxu0
        %v521 = vadd.f32 %v393, %v520
        %v522 = vpop.f32.mrf.mxu0
        %523 = vmatprep.mubr.bf16.mxu0 0
        %524 = vmatmul.mubr.bf16.gmra.mxu0 %v370
        %v525 = vpop.f32.mrf.mxu0
        %v526 = vadd.f32 %v393, %v525
        %v527 = vpop.f32.mrf.mxu0
        %v528 = vpop.f32.mrf.mxu0
        %v529 = vadd.f32 %v393, %v528
        %v530 = vpop.f32.mrf.mxu0
        %531 = vmatprep.mubr.bf16.mxu0 0
        %532 = vmatmul.mubr.bf16.gmra.mxu0 %v371
        %v533 = vpop.f32.mrf.mxu0
        %v534 = vadd.f32 %v393, %v533
        %v535 = vpop.f32.mrf.mxu0
        %v536 = vpop.f32.mrf.mxu0
        %v537 = vadd.f32 %v393, %v536
        %v538 = vpop.f32.mrf.mxu0
        %539 = vdwg.mxu0
        %v540 = vmax.f32 %v478, 0.0
        %v541 = vmax.f32 %v481, 0.0
        %v542 = vmax.f32 %v486, 0.0
        %v543 = vmax.f32 %v489, 0.0
        %v544 = vmax.f32 %v494, 0.0
        %v545 = vmax.f32 %v497, 0.0
        %v546 = vmax.f32 %v502, 0.0
        %v547 = vmax.f32 %v505, 0.0
        %v548 = vmax.f32 %v510, 0.0
        %v549 = vmax.f32 %v513, 0.0
        %v550 = vmax.f32 %v518, 0.0
        %v551 = vmax.f32 %v521, 0.0
        %v552 = vmax.f32 %v526, 0.0
        %v553 = vmax.f32 %v529, 0.0
        %v554 = vmax.f32 %v534, 0.0
        %v555 = vmax.f32 %v537, 0.0
        %v556 = vlaneseq
        %v557 = vshrl.u32 %v556, 7
        %v558 = vadd.s32 %v557, 8
        %v559 = vadd.s32 %v557, 16
        %v560 = vadd.s32 %v557, 24
        %v561 = vadd.s32 %v557, 32
        %v562 = vadd.s32 %v557, 40
        %v563 = vadd.s32 %v557, 48
        %v564 = vadd.s32 %v557, 56
        %v565 = vadd.s32 %v557, 64
        %v566 = vadd.s32 %v557, 72
        %v567 = vadd.s32 %v557, 80
        %v568 = vadd.s32 %v557, 88
        %v569 = vadd.s32 %v557, 96
        %v570 = vadd.s32 %v557, 104
        %v571 = vadd.s32 %v557, 112
        %v572 = vadd.s32 %v557, 120
        %v573 = vstv %s347
        %v574 = vadd.s32 %v557, %v573
        %v575 = vadd.s32 %v558, %v573
        %v576 = vadd.s32 %v559, %v573
        %v577 = vadd.s32 %v560, %v573
        %v578 = vadd.s32 %v561, %v573
        %v579 = vadd.s32 %v562, %v573
        %v580 = vadd.s32 %v563, %v573
        %v581 = vadd.s32 %v564, %v573
        %v582 = vadd.s32 %v565, %v573
        %v583 = vadd.s32 %v566, %v573
        %v584 = vadd.s32 %v567, %v573
        %v585 = vadd.s32 %v568, %v573
        %v586 = vadd.s32 %v569, %v573
        %v587 = vadd.s32 %v570, %v573
        %v588 = vadd.s32 %v571, %v573
        %v589 = vadd.s32 %v572, %v573
        %v590 = vlaneseq
        %v591 = vand.u32 %v590, 127
        %v592 = vmul.u32 %v574, 2654435761
        %v593 = vmul.u32 %v575, 2654435761
        %v594 = vmul.u32 %v576, 2654435761
        %v595 = vmul.u32 %v577, 2654435761
        %v596 = vmul.u32 %v578, 2654435761
        %v597 = vmul.u32 %v579, 2654435761
        %v598 = vmul.u32 %v580, 2654435761
        %v599 = vmul.u32 %v581, 2654435761
        %v600 = vmul.u32 %v582, 2654435761
        %v601 = vmul.u32 %v583, 2654435761
        %v602 = vmul.u32 %v584, 2654435761
        %v603 = vmul.u32 %v585, 2654435761
        %v604 = vmul.u32 %v586, 2654435761
        %v605 = vmul.u32 %v587, 2654435761
        %v606 = vmul.u32 %v588, 2654435761
        %v607 = vmul.u32 %v589, 2654435761
        %v608 = vmul.u32 %v591, 2246822519
        %v609 = vxor.u32 %v592, %v608
        %v610 = vxor.u32 %v593, %v608
        %v611 = vxor.u32 %v594, %v608
        %v612 = vxor.u32 %v595, %v608
        %v613 = vxor.u32 %v596, %v608
        %v614 = vxor.u32 %v597, %v608
        %v615 = vxor.u32 %v598, %v608
        %v616 = vxor.u32 %v599, %v608
        %v617 = vxor.u32 %v600, %v608
        %v618 = vxor.u32 %v601, %v608
        %v619 = vxor.u32 %v602, %v608
        %v620 = vxor.u32 %v603, %v608
        %v621 = vxor.u32 %v604, %v608
        %v622 = vxor.u32 %v605, %v608
        %v623 = vxor.u32 %v606, %v608
        %v624 = vxor.u32 %v607, %v608
        %s625 = smul.u32 %s346, 3266489917
        %s626 = sadd.s32 %s625, 1
        %v627 = vstv %s626
        %v628 = vxor.u32 %v609, %v627
        %v629 = vxor.u32 %v610, %v627
        %v630 = vxor.u32 %v611, %v627
        %v631 = vxor.u32 %v612, %v627
        %v632 = vxor.u32 %v613, %v627
        %v633 = vxor.u32 %v614, %v627
        %v634 = vxor.u32 %v615, %v627
        %v635 = vxor.u32 %v616, %v627
        %v636 = vxor.u32 %v617, %v627
        %v637 = vxor.u32 %v618, %v627
        %v638 = vxor.u32 %v619, %v627
        %v639 = vxor.u32 %v620, %v627
        %v640 = vxor.u32 %v621, %v627
        %v641 = vxor.u32 %v622, %v627
        %v642 = vxor.u32 %v623, %v627
        %v643 = vxor.u32 %v624, %v627
        %v644 = vshrl.u32 %v628, 16
        %v645 = vshrl.u32 %v629, 16
        %v646 = vshrl.u32 %v630, 16
        %v647 = vshrl.u32 %v631, 16
        %v648 = vshrl.u32 %v632, 16
        %v649 = vshrl.u32 %v633, 16
        %v650 = vshrl.u32 %v634, 16
        %v651 = vshrl.u32 %v635, 16
        %v652 = vshrl.u32 %v636, 16
        %v653 = vshrl.u32 %v637, 16
        %v654 = vshrl.u32 %v638, 16
        %v655 = vshrl.u32 %v639, 16
        %v656 = vshrl.u32 %v640, 16
        %v657 = vshrl.u32 %v641, 16
        %v658 = vshrl.u32 %v642, 16
        %v659 = vshrl.u32 %v643, 16
        %v660 = vxor.u32 %v628, %v644
        %v661 = vxor.u32 %v629, %v645
        %v662 = vxor.u32 %v630, %v646
        %v663 = vxor.u32 %v631, %v647
        %v664 = vxor.u32 %v632, %v648
        %v665 = vxor.u32 %v633, %v649
        %v666 = vxor.u32 %v634, %v650
        %v667 = vxor.u32 %v635, %v651
        %v668 = vxor.u32 %v636, %v652
        %v669 = vxor.u32 %v637, %v653
        %v670 = vxor.u32 %v638, %v654
        %v671 = vxor.u32 %v639, %v655
        %v672 = vxor.u32 %v640, %v656
        %v673 = vxor.u32 %v641, %v657
        %v674 = vxor.u32 %v642, %v658
        %v675 = vxor.u32 %v643, %v659
        %v676 = vmul.u32 %v660, 2146121005
        %v677 = vmul.u32 %v661, 2146121005
        %v678 = vmul.u32 %v662, 2146121005
        %v679 = vmul.u32 %v663, 2146121005
        %v680 = vmul.u32 %v664, 2146121005
        %v681 = vmul.u32 %v665, 2146121005
        %v682 = vmul.u32 %v666, 2146121005
        %v683 = vmul.u32 %v667, 2146121005
        %v684 = vmul.u32 %v668, 2146121005
        %v685 = vmul.u32 %v669, 2146121005
        %v686 = vmul.u32 %v670, 2146121005
        %v687 = vmul.u32 %v671, 2146121005
        %v688 = vmul.u32 %v672, 2146121005
        %v689 = vmul.u32 %v673, 2146121005
        %v690 = vmul.u32 %v674, 2146121005
        %v691 = vmul.u32 %v675, 2146121005
        %v692 = vshrl.u32 %v676, 15
        %v693 = vshrl.u32 %v677, 15
        %v694 = vshrl.u32 %v678, 15
        %v695 = vshrl.u32 %v679, 15
        %v696 = vshrl.u32 %v680, 15
        %v697 = vshrl.u32 %v681, 15
        %v698 = vshrl.u32 %v682, 15
        %v699 = vshrl.u32 %v683, 15
        %v700 = vshrl.u32 %v684, 15
        %v701 = vshrl.u32 %v685, 15
        %v702 = vshrl.u32 %v686, 15
        %v703 = vshrl.u32 %v687, 15
        %v704 = vshrl.u32 %v688, 15
        %v705 = vshrl.u32 %v689, 15
        %v706 = vshrl.u32 %v690, 15
        %v707 = vshrl.u32 %v691, 15
        %v708 = vxor.u32 %v676, %v692
        %v709 = vxor.u32 %v677, %v693
        %v710 = vxor.u32 %v678, %v694
        %v711 = vxor.u32 %v679, %v695
        %v712 = vxor.u32 %v680, %v696
        %v713 = vxor.u32 %v681, %v697
        %v714 = vxor.u32 %v682, %v698
        %v715 = vxor.u32 %v683, %v699
        %v716 = vxor.u32 %v684, %v700
        %v717 = vxor.u32 %v685, %v701
        %v718 = vxor.u32 %v686, %v702
        %v719 = vxor.u32 %v687, %v703
        %v720 = vxor.u32 %v688, %v704
        %v721 = vxor.u32 %v689, %v705
        %v722 = vxor.u32 %v690, %v706
        %v723 = vxor.u32 %v691, %v707
        %v724 = vmul.u32 %v708, 2221713035
        %v725 = vmul.u32 %v709, 2221713035
        %v726 = vmul.u32 %v710, 2221713035
        %v727 = vmul.u32 %v711, 2221713035
        %v728 = vmul.u32 %v712, 2221713035
        %v729 = vmul.u32 %v713, 2221713035
        %v730 = vmul.u32 %v714, 2221713035
        %v731 = vmul.u32 %v715, 2221713035
        %v732 = vmul.u32 %v716, 2221713035
        %v733 = vmul.u32 %v717, 2221713035
        %v734 = vmul.u32 %v718, 2221713035
        %v735 = vmul.u32 %v719, 2221713035
        %v736 = vmul.u32 %v720, 2221713035
        %v737 = vmul.u32 %v721, 2221713035
        %v738 = vmul.u32 %v722, 2221713035
        %v739 = vmul.u32 %v723, 2221713035
        %v740 = vshrl.u32 %v724, 16
        %v741 = vshrl.u32 %v725, 16
        %v742 = vshrl.u32 %v726, 16
        %v743 = vshrl.u32 %v727, 16
        %v744 = vshrl.u32 %v728, 16
        %v745 = vshrl.u32 %v729, 16
        %v746 = vshrl.u32 %v730, 16
        %v747 = vshrl.u32 %v731, 16
        %v748 = vshrl.u32 %v732, 16
        %v749 = vshrl.u32 %v733, 16
        %v750 = vshrl.u32 %v734, 16
        %v751 = vshrl.u32 %v735, 16
        %v752 = vshrl.u32 %v736, 16
        %v753 = vshrl.u32 %v737, 16
        %v754 = vshrl.u32 %v738, 16
        %v755 = vshrl.u32 %v739, 16
        %v756 = vxor.u32 %v724, %v740
        %v757 = vxor.u32 %v725, %v741
        %v758 = vxor.u32 %v726, %v742
        %v759 = vxor.u32 %v727, %v743
        %v760 = vxor.u32 %v728, %v744
        %v761 = vxor.u32 %v729, %v745
        %v762 = vxor.u32 %v730, %v746
        %v763 = vxor.u32 %v731, %v747
        %v764 = vxor.u32 %v732, %v748
        %v765 = vxor.u32 %v733, %v749
        %v766 = vxor.u32 %v734, %v750
        %v767 = vxor.u32 %v735, %v751
        %v768 = vxor.u32 %v736, %v752
        %v769 = vxor.u32 %v737, %v753
        %v770 = vxor.u32 %v738, %v754
        %v771 = vxor.u32 %v739, %v755
        %v772 = vshrl.u32 %v756, 8
        %v773 = vshrl.u32 %v757, 8
        %v774 = vshrl.u32 %v758, 8
        %v775 = vshrl.u32 %v759, 8
        %v776 = vshrl.u32 %v760, 8
        %v777 = vshrl.u32 %v761, 8
        %v778 = vshrl.u32 %v762, 8
        %v779 = vshrl.u32 %v763, 8
        %v780 = vshrl.u32 %v764, 8
        %v781 = vshrl.u32 %v765, 8
        %v782 = vshrl.u32 %v766, 8
        %v783 = vshrl.u32 %v767, 8
        %v784 = vshrl.u32 %v768, 8
        %v785 = vshrl.u32 %v769, 8
        %v786 = vshrl.u32 %v770, 8
        %v787 = vshrl.u32 %v771, 8
        %vm788 = vcmp.ge.s32.totalorder %v772, 1677722
        %vm789 = vcmp.ge.s32.totalorder %v773, 1677722
        %vm790 = vcmp.ge.s32.totalorder %v774, 1677722
        %vm791 = vcmp.ge.s32.totalorder %v775, 1677722
        %vm792 = vcmp.ge.s32.totalorder %v776, 1677722
        %vm793 = vcmp.ge.s32.totalorder %v777, 1677722
        %vm794 = vcmp.ge.s32.totalorder %v778, 1677722
        %vm795 = vcmp.ge.s32.totalorder %v779, 1677722
        %vm796 = vcmp.ge.s32.totalorder %v780, 1677722
        %vm797 = vcmp.ge.s32.totalorder %v781, 1677722
        %vm798 = vcmp.ge.s32.totalorder %v782, 1677722
        %vm799 = vcmp.ge.s32.totalorder %v783, 1677722
        %vm800 = vcmp.ge.s32.totalorder %v784, 1677722
        %vm801 = vcmp.ge.s32.totalorder %v785, 1677722
        %vm802 = vcmp.ge.s32.totalorder %v786, 1677722
        %vm803 = vcmp.ge.s32.totalorder %v787, 1677722
        %v804 = vmul.f32 %v540, 1.1111112
        %v805 = vmul.f32 %v541, 1.1111112
        %v806 = vmul.f32 %v542, 1.1111112
        %v807 = vmul.f32 %v543, 1.1111112
        %v808 = vmul.f32 %v544, 1.1111112
        %v809 = vmul.f32 %v545, 1.1111112
        %v810 = vmul.f32 %v546, 1.1111112
        %v811 = vmul.f32 %v547, 1.1111112
        %v812 = vmul.f32 %v548, 1.1111112
        %v813 = vmul.f32 %v549, 1.1111112
        %v814 = vmul.f32 %v550, 1.1111112
        %v815 = vmul.f32 %v551, 1.1111112
        %v816 = vmul.f32 %v552, 1.1111112
        %v817 = vmul.f32 %v553, 1.1111112
        %v818 = vmul.f32 %v554, 1.1111112
        %v819 = vmul.f32 %v555, 1.1111112
        %v820 = vsel %vm788, %v804, 0.0
        %v821 = vsel %vm789, %v805, 0.0
        %v822 = vsel %vm790, %v806, 0.0
        %v823 = vsel %vm791, %v807, 0.0
        %v824 = vsel %vm792, %v808, 0.0
        %v825 = vsel %vm793, %v809, 0.0
        %v826 = vsel %vm794, %v810, 0.0
        %v827 = vsel %vm795, %v811, 0.0
        %v828 = vsel %vm796, %v812, 0.0
        %v829 = vsel %vm797, %v813, 0.0
        %v830 = vsel %vm798, %v814, 0.0
        %v831 = vsel %vm799, %v815, 0.0
        %v832 = vsel %vm800, %v816, 0.0
        %v833 = vsel %vm801, %v817, 0.0
        %v834 = vsel %vm802, %v818, 0.0
        %v835 = vsel %vm803, %v819, 0.0
        %v836 = vpack.c.bf16 %v821, %v820
        %v837 = vpack.c.bf16 %v823, %v822
        %v838 = vpack.c.bf16 %v825, %v824
        %v839 = vpack.c.bf16 %v827, %v826
        %v840 = vpack.c.bf16 %v829, %v828
        %v841 = vpack.c.bf16 %v831, %v830
        %v842 = vpack.c.bf16 %v833, %v832
        %v843 = vpack.c.bf16 %v835, %v834
        %v844 = vld [vmem:[#allocation9] sm:$0xf]
        %v845 = vld [vmem:[#allocation9 + $0x4] sm:$0xf]
        %v846 = vld [vmem:[#allocation9 + $0x8] sm:$0xf]
        %v847 = vld [vmem:[#allocation9 + $0xc] sm:$0xf]
        %v848 = vld [vmem:[#allocation9 + $0x10] sm:$0xf]
        %v849 = vld [vmem:[#allocation9 + $0x14] sm:$0xf]
        %v850 = vld [vmem:[#allocation9 + $0x18] sm:$0xf]
        %v851 = vld [vmem:[#allocation9 + $0x1c] sm:$0xf]
        %v852 = vld [vmem:[#allocation9 + $0x20] sm:$0xf]
        %v853 = vld [vmem:[#allocation9 + $0x24] sm:$0xf]
        %v854 = vld [vmem:[#allocation9 + $0x28] sm:$0xf]
        %v855 = vld [vmem:[#allocation9 + $0x2c] sm:$0xf]
        %v856 = vld [vmem:[#allocation9 + $0x30] sm:$0xf]
        %v857 = vld [vmem:[#allocation9 + $0x34] sm:$0xf]
        %v858 = vld [vmem:[#allocation9 + $0x38] sm:$0xf]
        %v859 = vld [vmem:[#allocation9 + $0x3c] sm:$0xf]
        %v860 = vld [vmem:[%s5] sm:$0x1]
        %v862 = vlaneseq
        %v863 = vshrl.u32 %v862, 7
        %v864 = vsub.s32 0, %v863
        %v865 = vrot.slane %v860, %v864
        %v883 = vunpack.c.l.b16 %v844
        %v884 = vunpack.c.l.b16 %v845
        %v885 = vunpack.c.l.b16 %v846
        %v886 = vunpack.c.l.b16 %v847
        %v887 = vunpack.c.l.b16 %v848
        %v888 = vunpack.c.l.b16 %v849
        %v889 = vunpack.c.l.b16 %v850
        %v890 = vunpack.c.l.b16 %v851
        %v891 = vunpack.c.l.b16 %v852
        %v892 = vunpack.c.l.b16 %v853
        %v893 = vunpack.c.l.b16 %v854
        %v894 = vunpack.c.l.b16 %v855
        %v895 = vunpack.c.l.b16 %v856
        %v896 = vunpack.c.l.b16 %v857
        %v897 = vunpack.c.l.b16 %v858
        %v898 = vunpack.c.l.b16 %v859
        %v899 = vpack.c.b16 %v884, %v883
        %v900 = vpack.c.b16 %v886, %v885
        %v901 = vpack.c.b16 %v888, %v887
        %v902 = vpack.c.b16 %v890, %v889
        %v903 = vpack.c.b16 %v892, %v891
        %v904 = vpack.c.b16 %v894, %v893
        %v905 = vpack.c.b16 %v896, %v895
        %v906 = vpack.c.b16 %v898, %v897
        %915 = vmatprep.subr.bf16.mxu0 0
        %916 = vmatpush1.bf16.msra.mxu0 %v906
        %917 = vmatprep.subr.bf16.mxu0 0
        %918 = vmatpush1.bf16.msra.mxu0 %v905
        %919 = vmatprep.subr.bf16.mxu0 0
        %920 = vmatpush1.bf16.msra.mxu0 %v904
        %921 = vmatprep.subr.bf16.mxu0 0
        %922 = vmatpush1.bf16.msra.mxu0 %v903
        %923 = vmatprep.subr.bf16.mxu0 0
        %924 = vmatpush1.bf16.msra.mxu0 %v902
        %925 = vmatprep.subr.bf16.mxu0 0
        %926 = vmatpush1.bf16.msra.mxu0 %v901
        %927 = vmatprep.subr.bf16.mxu0 0
        %928 = vmatpush1.bf16.msra.mxu0 %v900
        %929 = vmatprep.subr.bf16.mxu0 0
        %930 = vmatpush1.bf16.msra.mxu0 %v899
        %931 = vmatprep.subr.bf16.mxu0 0
        %932 = vmatpush2.bf16.msra.mxu0 0
        %933 = vmatprep.subr.bf16.mxu0 0
        %934 = vmatpush2.bf16.msra.mxu0 0
        %935 = vmatprep.subr.bf16.mxu0 0
        %936 = vmatpush2.bf16.msra.mxu0 0
        %937 = vmatprep.subr.bf16.mxu0 0
        %938 = vmatpush2.bf16.msra.mxu0 0
        %939 = vmatprep.subr.bf16.mxu0 0
        %940 = vmatpush2.bf16.msra.mxu0 0
        %941 = vmatprep.subr.bf16.mxu0 0
        %942 = vmatpush2.bf16.msra.mxu0 0
        %943 = vmatprep.subr.bf16.mxu0 0
        %944 = vmatpush2.bf16.msra.mxu0 0
        %945 = vmatprep.subr.bf16.mxu0 0
        %946 = vmatpush2.bf16.msra.mxu0 0
        %947 = vmatprep.mubr.bf16.mxu0 0
        %948 = vmatmul.mubr.bf16.gmra.mxu0 %v836
        %v949 = vpop.f32.mrf.mxu0
        %v950 = vadd.f32 %v865, %v949
        %v951 = vpop.f32.mrf.mxu0
        %v952 = vpop.f32.mrf.mxu0
        %v953 = vadd.f32 %v865, %v952
        %v954 = vpop.f32.mrf.mxu0
        %955 = vmatprep.mubr.bf16.mxu0 0
        %956 = vmatmul.mubr.bf16.gmra.mxu0 %v837
        %v957 = vpop.f32.mrf.mxu0
        %v958 = vadd.f32 %v865, %v957
        %v959 = vpop.f32.mrf.mxu0
        %v960 = vpop.f32.mrf.mxu0
        %v961 = vadd.f32 %v865, %v960
        %v962 = vpop.f32.mrf.mxu0
        %963 = vmatprep.mubr.bf16.mxu0 0
        %964 = vmatmul.mubr.bf16.gmra.mxu0 %v838
        %v965 = vpop.f32.mrf.mxu0
        %v966 = vadd.f32 %v865, %v965
        %v967 = vpop.f32.mrf.mxu0
        %v968 = vpop.f32.mrf.mxu0
        %v969 = vadd.f32 %v865, %v968
        %v970 = vpop.f32.mrf.mxu0
        %971 = vmatprep.mubr.bf16.mxu0 0
        %972 = vmatmul.mubr.bf16.gmra.mxu0 %v839
        %v973 = vpop.f32.mrf.mxu0
        %v974 = vadd.f32 %v865, %v973
        %v975 = vpop.f32.mrf.mxu0
        %v976 = vpop.f32.mrf.mxu0
        %v977 = vadd.f32 %v865, %v976
        %v978 = vpop.f32.mrf.mxu0
        %979 = vmatprep.mubr.bf16.mxu0 0
        %980 = vmatmul.mubr.bf16.gmra.mxu0 %v840
        %v981 = vpop.f32.mrf.mxu0
        %v982 = vadd.f32 %v865, %v981
        %v983 = vpop.f32.mrf.mxu0
        %v984 = vpop.f32.mrf.mxu0
        %v985 = vadd.f32 %v865, %v984
        %v986 = vpop.f32.mrf.mxu0
        %987 = vmatprep.mubr.bf16.mxu0 0
        %988 = vmatmul.mubr.bf16.gmra.mxu0 %v841
        %v989 = vpop.f32.mrf.mxu0
        %v990 = vadd.f32 %v865, %v989
        %v991 = vpop.f32.mrf.mxu0
        %v992 = vpop.f32.mrf.mxu0
        %v993 = vadd.f32 %v865, %v992
        %v994 = vpop.f32.mrf.mxu0
        %995 = vmatprep.mubr.bf16.mxu0 0
        %996 = vmatmul.mubr.bf16.gmra.mxu0 %v842
        %v997 = vpop.f32.mrf.mxu0
        %v998 = vadd.f32 %v865, %v997
        %v999 = vpop.f32.mrf.mxu0
        %v1000 = vpop.f32.mrf.mxu0
        %v1001 = vadd.f32 %v865, %v1000
        %v1002 = vpop.f32.mrf.mxu0
        %1003 = vmatprep.mubr.bf16.mxu0 0
        %1004 = vmatmul.mubr.bf16.gmra.mxu0 %v843
        %v1005 = vpop.f32.mrf.mxu0
        %v1006 = vadd.f32 %v865, %v1005
        %v1007 = vpop.f32.mrf.mxu0
        %v1008 = vpop.f32.mrf.mxu0
        %v1009 = vadd.f32 %v865, %v1008
        %v1010 = vpop.f32.mrf.mxu0
        %1011 = vdwg.mxu0
        %v1012 = vmax.f32 %v950, 0.0
        %v1013 = vmax.f32 %v953, 0.0
        %v1014 = vmax.f32 %v958, 0.0
        %v1015 = vmax.f32 %v961, 0.0
        %v1016 = vmax.f32 %v966, 0.0
        %v1017 = vmax.f32 %v969, 0.0
        %v1018 = vmax.f32 %v974, 0.0
        %v1019 = vmax.f32 %v977, 0.0
        %v1020 = vmax.f32 %v982, 0.0
        %v1021 = vmax.f32 %v985, 0.0
        %v1022 = vmax.f32 %v990, 0.0
        %v1023 = vmax.f32 %v993, 0.0
        %v1024 = vmax.f32 %v998, 0.0
        %v1025 = vmax.f32 %v1001, 0.0
        %v1026 = vmax.f32 %v1006, 0.0
        %v1027 = vmax.f32 %v1009, 0.0
        %s1028 = sadd.s32 %s625, 2
        %v1029 = vstv %s1028
        %v1030 = vxor.u32 %v609, %v1029
        %v1031 = vxor.u32 %v610, %v1029
        %v1032 = vxor.u32 %v611, %v1029
        %v1033 = vxor.u32 %v612, %v1029
        %v1034 = vxor.u32 %v613, %v1029
        %v1035 = vxor.u32 %v614, %v1029
        %v1036 = vxor.u32 %v615, %v1029
        %v1037 = vxor.u32 %v616, %v1029
        %v1038 = vxor.u32 %v617, %v1029
        %v1039 = vxor.u32 %v618, %v1029
        %v1040 = vxor.u32 %v619, %v1029
        %v1041 = vxor.u32 %v620, %v1029
        %v1042 = vxor.u32 %v621, %v1029
        %v1043 = vxor.u32 %v622, %v1029
        %v1044 = vxor.u32 %v623, %v1029
        %v1045 = vxor.u32 %v624, %v1029
        %v1046 = vshrl.u32 %v1030, 16
        %v1047 = vshrl.u32 %v1031, 16
        %v1048 = vshrl.u32 %v1032, 16
        %v1049 = vshrl.u32 %v1033, 16
        %v1050 = vshrl.u32 %v1034, 16
        %v1051 = vshrl.u32 %v1035, 16
        %v1052 = vshrl.u32 %v1036, 16
        %v1053 = vshrl.u32 %v1037, 16
        %v1054 = vshrl.u32 %v1038, 16
        %v1055 = vshrl.u32 %v1039, 16
        %v1056 = vshrl.u32 %v1040, 16
        %v1057 = vshrl.u32 %v1041, 16
        %v1058 = vshrl.u32 %v1042, 16
        %v1059 = vshrl.u32 %v1043, 16
        %v1060 = vshrl.u32 %v1044, 16
        %v1061 = vshrl.u32 %v1045, 16
        %v1062 = vxor.u32 %v1030, %v1046
        %v1063 = vxor.u32 %v1031, %v1047
        %v1064 = vxor.u32 %v1032, %v1048
        %v1065 = vxor.u32 %v1033, %v1049
        %v1066 = vxor.u32 %v1034, %v1050
        %v1067 = vxor.u32 %v1035, %v1051
        %v1068 = vxor.u32 %v1036, %v1052
        %v1069 = vxor.u32 %v1037, %v1053
        %v1070 = vxor.u32 %v1038, %v1054
        %v1071 = vxor.u32 %v1039, %v1055
        %v1072 = vxor.u32 %v1040, %v1056
        %v1073 = vxor.u32 %v1041, %v1057
        %v1074 = vxor.u32 %v1042, %v1058
        %v1075 = vxor.u32 %v1043, %v1059
        %v1076 = vxor.u32 %v1044, %v1060
        %v1077 = vxor.u32 %v1045, %v1061
        %v1078 = vmul.u32 %v1062, 2146121005
        %v1079 = vmul.u32 %v1063, 2146121005
        %v1080 = vmul.u32 %v1064, 2146121005
        %v1081 = vmul.u32 %v1065, 2146121005
        %v1082 = vmul.u32 %v1066, 2146121005
        %v1083 = vmul.u32 %v1067, 2146121005
        %v1084 = vmul.u32 %v1068, 2146121005
        %v1085 = vmul.u32 %v1069, 2146121005
        %v1086 = vmul.u32 %v1070, 2146121005
        %v1087 = vmul.u32 %v1071, 2146121005
        %v1088 = vmul.u32 %v1072, 2146121005
        %v1089 = vmul.u32 %v1073, 2146121005
        %v1090 = vmul.u32 %v1074, 2146121005
        %v1091 = vmul.u32 %v1075, 2146121005
        %v1092 = vmul.u32 %v1076, 2146121005
        %v1093 = vmul.u32 %v1077, 2146121005
        %v1094 = vshrl.u32 %v1078, 15
        %v1095 = vshrl.u32 %v1079, 15
        %v1096 = vshrl.u32 %v1080, 15
        %v1097 = vshrl.u32 %v1081, 15
        %v1098 = vshrl.u32 %v1082, 15
        %v1099 = vshrl.u32 %v1083, 15
        %v1100 = vshrl.u32 %v1084, 15
        %v1101 = vshrl.u32 %v1085, 15
        %v1102 = vshrl.u32 %v1086, 15
        %v1103 = vshrl.u32 %v1087, 15
        %v1104 = vshrl.u32 %v1088, 15
        %v1105 = vshrl.u32 %v1089, 15
        %v1106 = vshrl.u32 %v1090, 15
        %v1107 = vshrl.u32 %v1091, 15
        %v1108 = vshrl.u32 %v1092, 15
        %v1109 = vshrl.u32 %v1093, 15
        %v1110 = vxor.u32 %v1078, %v1094
        %v1111 = vxor.u32 %v1079, %v1095
        %v1112 = vxor.u32 %v1080, %v1096
        %v1113 = vxor.u32 %v1081, %v1097
        %v1114 = vxor.u32 %v1082, %v1098
        %v1115 = vxor.u32 %v1083, %v1099
        %v1116 = vxor.u32 %v1084, %v1100
        %v1117 = vxor.u32 %v1085, %v1101
        %v1118 = vxor.u32 %v1086, %v1102
        %v1119 = vxor.u32 %v1087, %v1103
        %v1120 = vxor.u32 %v1088, %v1104
        %v1121 = vxor.u32 %v1089, %v1105
        %v1122 = vxor.u32 %v1090, %v1106
        %v1123 = vxor.u32 %v1091, %v1107
        %v1124 = vxor.u32 %v1092, %v1108
        %v1125 = vxor.u32 %v1093, %v1109
        %v1126 = vmul.u32 %v1110, 2221713035
        %v1127 = vmul.u32 %v1111, 2221713035
        %v1128 = vmul.u32 %v1112, 2221713035
        %v1129 = vmul.u32 %v1113, 2221713035
        %v1130 = vmul.u32 %v1114, 2221713035
        %v1131 = vmul.u32 %v1115, 2221713035
        %v1132 = vmul.u32 %v1116, 2221713035
        %v1133 = vmul.u32 %v1117, 2221713035
        %v1134 = vmul.u32 %v1118, 2221713035
        %v1135 = vmul.u32 %v1119, 2221713035
        %v1136 = vmul.u32 %v1120, 2221713035
        %v1137 = vmul.u32 %v1121, 2221713035
        %v1138 = vmul.u32 %v1122, 2221713035
        %v1139 = vmul.u32 %v1123, 2221713035
        %v1140 = vmul.u32 %v1124, 2221713035
        %v1141 = vmul.u32 %v1125, 2221713035
        %v1142 = vshrl.u32 %v1126, 16
        %v1143 = vshrl.u32 %v1127, 16
        %v1144 = vshrl.u32 %v1128, 16
        %v1145 = vshrl.u32 %v1129, 16
        %v1146 = vshrl.u32 %v1130, 16
        %v1147 = vshrl.u32 %v1131, 16
        %v1148 = vshrl.u32 %v1132, 16
        %v1149 = vshrl.u32 %v1133, 16
        %v1150 = vshrl.u32 %v1134, 16
        %v1151 = vshrl.u32 %v1135, 16
        %v1152 = vshrl.u32 %v1136, 16
        %v1153 = vshrl.u32 %v1137, 16
        %v1154 = vshrl.u32 %v1138, 16
        %v1155 = vshrl.u32 %v1139, 16
        %v1156 = vshrl.u32 %v1140, 16
        %v1157 = vshrl.u32 %v1141, 16
        %v1158 = vxor.u32 %v1126, %v1142
        %v1159 = vxor.u32 %v1127, %v1143
        %v1160 = vxor.u32 %v1128, %v1144
        %v1161 = vxor.u32 %v1129, %v1145
        %v1162 = vxor.u32 %v1130, %v1146
        %v1163 = vxor.u32 %v1131, %v1147
        %v1164 = vxor.u32 %v1132, %v1148
        %v1165 = vxor.u32 %v1133, %v1149
        %v1166 = vxor.u32 %v1134, %v1150
        %v1167 = vxor.u32 %v1135, %v1151
        %v1168 = vxor.u32 %v1136, %v1152
        %v1169 = vxor.u32 %v1137, %v1153
        %v1170 = vxor.u32 %v1138, %v1154
        %v1171 = vxor.u32 %v1139, %v1155
        %v1172 = vxor.u32 %v1140, %v1156
        %v1173 = vxor.u32 %v1141, %v1157
        %v1174 = vshrl.u32 %v1158, 8
        %v1175 = vshrl.u32 %v1159, 8
        %v1176 = vshrl.u32 %v1160, 8
        %v1177 = vshrl.u32 %v1161, 8
        %v1178 = vshrl.u32 %v1162, 8
        %v1179 = vshrl.u32 %v1163, 8
        %v1180 = vshrl.u32 %v1164, 8
        %v1181 = vshrl.u32 %v1165, 8
        %v1182 = vshrl.u32 %v1166, 8
        %v1183 = vshrl.u32 %v1167, 8
        %v1184 = vshrl.u32 %v1168, 8
        %v1185 = vshrl.u32 %v1169, 8
        %v1186 = vshrl.u32 %v1170, 8
        %v1187 = vshrl.u32 %v1171, 8
        %v1188 = vshrl.u32 %v1172, 8
        %v1189 = vshrl.u32 %v1173, 8
        %vm1190 = vcmp.ge.s32.totalorder %v1174, 3355443
        %vm1191 = vcmp.ge.s32.totalorder %v1175, 3355443
        %vm1192 = vcmp.ge.s32.totalorder %v1176, 3355443
        %vm1193 = vcmp.ge.s32.totalorder %v1177, 3355443
        %vm1194 = vcmp.ge.s32.totalorder %v1178, 3355443
        %vm1195 = vcmp.ge.s32.totalorder %v1179, 3355443
        %vm1196 = vcmp.ge.s32.totalorder %v1180, 3355443
        %vm1197 = vcmp.ge.s32.totalorder %v1181, 3355443
        %vm1198 = vcmp.ge.s32.totalorder %v1182, 3355443
        %vm1199 = vcmp.ge.s32.totalorder %v1183, 3355443
        %vm1200 = vcmp.ge.s32.totalorder %v1184, 3355443
        %vm1201 = vcmp.ge.s32.totalorder %v1185, 3355443
        %vm1202 = vcmp.ge.s32.totalorder %v1186, 3355443
        %vm1203 = vcmp.ge.s32.totalorder %v1187, 3355443
        %vm1204 = vcmp.ge.s32.totalorder %v1188, 3355443
        %vm1205 = vcmp.ge.s32.totalorder %v1189, 3355443
        %v1206 = vmul.f32 %v1012, 1.25
        %v1207 = vmul.f32 %v1013, 1.25
        %v1208 = vmul.f32 %v1014, 1.25
        %v1209 = vmul.f32 %v1015, 1.25
        %v1210 = vmul.f32 %v1016, 1.25
        %v1211 = vmul.f32 %v1017, 1.25
        %v1212 = vmul.f32 %v1018, 1.25
        %v1213 = vmul.f32 %v1019, 1.25
        %v1214 = vmul.f32 %v1020, 1.25
        %v1215 = vmul.f32 %v1021, 1.25
        %v1216 = vmul.f32 %v1022, 1.25
        %v1217 = vmul.f32 %v1023, 1.25
        %v1218 = vmul.f32 %v1024, 1.25
        %v1219 = vmul.f32 %v1025, 1.25
        %v1220 = vmul.f32 %v1026, 1.25
        %v1221 = vmul.f32 %v1027, 1.25
        %v1222 = vsel %vm1190, %v1206, 0.0
        %v1223 = vsel %vm1191, %v1207, 0.0
        %v1224 = vsel %vm1192, %v1208, 0.0
        %v1225 = vsel %vm1193, %v1209, 0.0
        %v1226 = vsel %vm1194, %v1210, 0.0
        %v1227 = vsel %vm1195, %v1211, 0.0
        %v1228 = vsel %vm1196, %v1212, 0.0
        %v1229 = vsel %vm1197, %v1213, 0.0
        %v1230 = vsel %vm1198, %v1214, 0.0
        %v1231 = vsel %vm1199, %v1215, 0.0
        %v1232 = vsel %vm1200, %v1216, 0.0
        %v1233 = vsel %vm1201, %v1217, 0.0
        %v1234 = vsel %vm1202, %v1218, 0.0
        %v1235 = vsel %vm1203, %v1219, 0.0
        %v1236 = vsel %vm1204, %v1220, 0.0
        %v1237 = vsel %vm1205, %v1221, 0.0
        %v1238 = vpack.c.bf16 %v1223, %v1222
        %v1239 = vpack.c.bf16 %v1225, %v1224
        %v1240 = vpack.c.bf16 %v1227, %v1226
        %v1241 = vpack.c.bf16 %v1229, %v1228
        %v1242 = vpack.c.bf16 %v1231, %v1230
        %v1243 = vpack.c.bf16 %v1233, %v1232
        %v1244 = vpack.c.bf16 %v1235, %v1234
        %v1245 = vpack.c.bf16 %v1237, %v1236
        %v1246 = vld [vmem:[#allocation10] sm:$0xf]
        %v1247 = vld [vmem:[#allocation10 + $0x4] sm:$0xf]
        %v1248 = vld [vmem:[#allocation10 + $0x8] sm:$0xf]
        %v1249 = vld [vmem:[#allocation10 + $0xc] sm:$0xf]
        %v1250 = vld [vmem:[#allocation10 + $0x10] sm:$0xf]
        %v1251 = vld [vmem:[#allocation10 + $0x14] sm:$0xf]
        %v1252 = vld [vmem:[#allocation10 + $0x18] sm:$0xf]
        %v1253 = vld [vmem:[#allocation10 + $0x1c] sm:$0xf]
        %v1254 = vld [vmem:[#allocation10 + $0x20] sm:$0xf]
        %v1255 = vld [vmem:[#allocation10 + $0x24] sm:$0xf]
        %v1256 = vld [vmem:[#allocation10 + $0x28] sm:$0xf]
        %v1257 = vld [vmem:[#allocation10 + $0x2c] sm:$0xf]
        %v1258 = vld [vmem:[#allocation10 + $0x30] sm:$0xf]
        %v1259 = vld [vmem:[#allocation10 + $0x34] sm:$0xf]
        %v1260 = vld [vmem:[#allocation10 + $0x38] sm:$0xf]
        %v1261 = vld [vmem:[#allocation10 + $0x3c] sm:$0xf]
        %v1262 = vld [vmem:[%s7] sm:$0x1]
        %v1264 = vlaneseq
        %v1265 = vshrl.u32 %v1264, 7
        %v1266 = vsub.s32 0, %v1265
        %v1267 = vrot.slane %v1262, %v1266
        %v1285 = vunpack.c.l.b16 %v1246
        %v1286 = vunpack.c.l.b16 %v1247
        %v1287 = vunpack.c.l.b16 %v1248
        %v1288 = vunpack.c.l.b16 %v1249
        %v1289 = vunpack.c.l.b16 %v1250
        %v1290 = vunpack.c.l.b16 %v1251
        %v1291 = vunpack.c.l.b16 %v1252
        %v1292 = vunpack.c.l.b16 %v1253
        %v1293 = vunpack.c.l.b16 %v1254
        %v1294 = vunpack.c.l.b16 %v1255
        %v1295 = vunpack.c.l.b16 %v1256
        %v1296 = vunpack.c.l.b16 %v1257
        %v1297 = vunpack.c.l.b16 %v1258
        %v1298 = vunpack.c.l.b16 %v1259
        %v1299 = vunpack.c.l.b16 %v1260
        %v1300 = vunpack.c.l.b16 %v1261
        %v1301 = vpack.c.b16 %v1286, %v1285
        %v1302 = vpack.c.b16 %v1288, %v1287
        %v1303 = vpack.c.b16 %v1290, %v1289
        %v1304 = vpack.c.b16 %v1292, %v1291
        %v1305 = vpack.c.b16 %v1294, %v1293
        %v1306 = vpack.c.b16 %v1296, %v1295
        %v1307 = vpack.c.b16 %v1298, %v1297
        %v1308 = vpack.c.b16 %v1300, %v1299
        %1317 = vmatprep.subr.bf16.mxu0 0
        %1318 = vmatpush1.bf16.msra.mxu0 %v1308
        %1319 = vmatprep.subr.bf16.mxu0 0
        %1320 = vmatpush1.bf16.msra.mxu0 %v1307
        %1321 = vmatprep.subr.bf16.mxu0 0
        %1322 = vmatpush1.bf16.msra.mxu0 %v1306
        %1323 = vmatprep.subr.bf16.mxu0 0
        %1324 = vmatpush1.bf16.msra.mxu0 %v1305
        %1325 = vmatprep.subr.bf16.mxu0 0
        %1326 = vmatpush1.bf16.msra.mxu0 %v1304
        %1327 = vmatprep.subr.bf16.mxu0 0
        %1328 = vmatpush1.bf16.msra.mxu0 %v1303
        %1329 = vmatprep.subr.bf16.mxu0 0
        %1330 = vmatpush1.bf16.msra.mxu0 %v1302
        %1331 = vmatprep.subr.bf16.mxu0 0
        %1332 = vmatpush1.bf16.msra.mxu0 %v1301
        %1333 = vmatprep.subr.bf16.mxu0 0
        %1334 = vmatpush2.bf16.msra.mxu0 0
        %1335 = vmatprep.subr.bf16.mxu0 0
        %1336 = vmatpush2.bf16.msra.mxu0 0
        %1337 = vmatprep.subr.bf16.mxu0 0
        %1338 = vmatpush2.bf16.msra.mxu0 0
        %1339 = vmatprep.subr.bf16.mxu0 0
        %1340 = vmatpush2.bf16.msra.mxu0 0
        %1341 = vmatprep.subr.bf16.mxu0 0
        %1342 = vmatpush2.bf16.msra.mxu0 0
        %1343 = vmatprep.subr.bf16.mxu0 0
        %1344 = vmatpush2.bf16.msra.mxu0 0
        %1345 = vmatprep.subr.bf16.mxu0 0
        %1346 = vmatpush2.bf16.msra.mxu0 0
        %1347 = vmatprep.subr.bf16.mxu0 0
        %1348 = vmatpush2.bf16.msra.mxu0 0
        %1349 = vmatprep.mubr.bf16.mxu0 0
        %1350 = vmatmul.mubr.bf16.gmra.mxu0 %v1238
        %v1351 = vpop.f32.mrf.mxu0
        %v1352 = vadd.f32 %v1267, %v1351
        %v1353 = vpop.f32.mrf.mxu0
        %v1354 = vpop.f32.mrf.mxu0
        %v1355 = vadd.f32 %v1267, %v1354
        %v1356 = vpop.f32.mrf.mxu0
        %1357 = vmatprep.mubr.bf16.mxu0 0
        %1358 = vmatmul.mubr.bf16.gmra.mxu0 %v1239
        %v1359 = vpop.f32.mrf.mxu0
        %v1360 = vadd.f32 %v1267, %v1359
        %v1361 = vpop.f32.mrf.mxu0
        %v1362 = vpop.f32.mrf.mxu0
        %v1363 = vadd.f32 %v1267, %v1362
        %v1364 = vpop.f32.mrf.mxu0
        %1365 = vmatprep.mubr.bf16.mxu0 0
        %1366 = vmatmul.mubr.bf16.gmra.mxu0 %v1240
        %v1367 = vpop.f32.mrf.mxu0
        %v1368 = vadd.f32 %v1267, %v1367
        %v1369 = vpop.f32.mrf.mxu0
        %v1370 = vpop.f32.mrf.mxu0
        %v1371 = vadd.f32 %v1267, %v1370
        %v1372 = vpop.f32.mrf.mxu0
        %1373 = vmatprep.mubr.bf16.mxu0 0
        %1374 = vmatmul.mubr.bf16.gmra.mxu0 %v1241
        %v1375 = vpop.f32.mrf.mxu0
        %v1376 = vadd.f32 %v1267, %v1375
        %v1377 = vpop.f32.mrf.mxu0
        %v1378 = vpop.f32.mrf.mxu0
        %v1379 = vadd.f32 %v1267, %v1378
        %v1380 = vpop.f32.mrf.mxu0
        %1381 = vmatprep.mubr.bf16.mxu0 0
        %1382 = vmatmul.mubr.bf16.gmra.mxu0 %v1242
        %v1383 = vpop.f32.mrf.mxu0
        %v1384 = vadd.f32 %v1267, %v1383
        %v1385 = vpop.f32.mrf.mxu0
        %v1386 = vpop.f32.mrf.mxu0
        %v1387 = vadd.f32 %v1267, %v1386
        %v1388 = vpop.f32.mrf.mxu0
        %1389 = vmatprep.mubr.bf16.mxu0 0
        %1390 = vmatmul.mubr.bf16.gmra.mxu0 %v1243
        %v1391 = vpop.f32.mrf.mxu0
        %v1392 = vadd.f32 %v1267, %v1391
        %v1393 = vpop.f32.mrf.mxu0
        %v1394 = vpop.f32.mrf.mxu0
        %v1395 = vadd.f32 %v1267, %v1394
        %v1396 = vpop.f32.mrf.mxu0
        %1397 = vmatprep.mubr.bf16.mxu0 0
        %1398 = vmatmul.mubr.bf16.gmra.mxu0 %v1244
        %v1399 = vpop.f32.mrf.mxu0
        %v1400 = vadd.f32 %v1267, %v1399
        %v1401 = vpop.f32.mrf.mxu0
        %v1402 = vpop.f32.mrf.mxu0
        %v1403 = vadd.f32 %v1267, %v1402
        %v1404 = vpop.f32.mrf.mxu0
        %1405 = vmatprep.mubr.bf16.mxu0 0
        %1406 = vmatmul.mubr.bf16.gmra.mxu0 %v1245
        %v1407 = vpop.f32.mrf.mxu0
        %v1408 = vadd.f32 %v1267, %v1407
        %v1409 = vpop.f32.mrf.mxu0
        %v1410 = vpop.f32.mrf.mxu0
        %v1411 = vadd.f32 %v1267, %v1410
        %v1412 = vpop.f32.mrf.mxu0
        %1413 = vdwg.mxu0
        %vm1414 = vcmp.lt.s32.totalorder %v591, 4
        %v1415 = vsel %vm1414, %v1352, -1e+30
        %v1416 = vsel %vm1414, %v1355, -1e+30
        %v1417 = vsel %vm1414, %v1360, -1e+30
        %v1418 = vsel %vm1414, %v1363, -1e+30
        %v1419 = vsel %vm1414, %v1368, -1e+30
        %v1420 = vsel %vm1414, %v1371, -1e+30
        %v1421 = vsel %vm1414, %v1376, -1e+30
        %v1422 = vsel %vm1414, %v1379, -1e+30
        %v1423 = vsel %vm1414, %v1384, -1e+30
        %v1424 = vsel %vm1414, %v1387, -1e+30
        %v1425 = vsel %vm1414, %v1392, -1e+30
        %v1426 = vsel %vm1414, %v1395, -1e+30
        %v1427 = vsel %vm1414, %v1400, -1e+30
        %v1428 = vsel %vm1414, %v1403, -1e+30
        %v1429 = vsel %vm1414, %v1408, -1e+30
        %v1430 = vsel %vm1414, %v1411, -1e+30
        %1431 = vmax.xlane.f32.xlu0 %v1415
        %v1432 = vpop.xlane.xlu0 %1431
        %1433 = vmax.xlane.f32.xlu0 %v1416
        %v1434 = vpop.xlane.xlu0 %1433
        %1435 = vmax.xlane.f32.xlu0 %v1417
        %v1436 = vpop.xlane.xlu0 %1435
        %1437 = vmax.xlane.f32.xlu0 %v1418
        %v1438 = vpop.xlane.xlu0 %1437
        %1439 = vmax.xlane.f32.xlu0 %v1419
        %v1440 = vpop.xlane.xlu0 %1439
        %1441 = vmax.xlane.f32.xlu0 %v1420
        %v1442 = vpop.xlane.xlu0 %1441
        %1443 = vmax.xlane.f32.xlu0 %v1421
        %v1444 = vpop.xlane.xlu0 %1443
        %1445 = vmax.xlane.f32.xlu0 %v1422
        %v1446 = vpop.xlane.xlu0 %1445
        %1447 = vmax.xlane.f32.xlu0 %v1423
        %v1448 = vpop.xlane.xlu0 %1447
        %1449 = vmax.xlane.f32.xlu0 %v1424
        %v1450 = vpop.xlane.xlu0 %1449
        %1451 = vmax.xlane.f32.xlu0 %v1425
        %v1452 = vpop.xlane.xlu0 %1451
        %1453 = vmax.xlane.f32.xlu0 %v1426
        %v1454 = vpop.xlane.xlu0 %1453
        %1455 = vmax.xlane.f32.xlu0 %v1427
        %v1456 = vpop.xlane.xlu0 %1455
        %1457 = vmax.xlane.f32.xlu0 %v1428
        %v1458 = vpop.xlane.xlu0 %1457
        %1459 = vmax.xlane.f32.xlu0 %v1429
        %v1460 = vpop.xlane.xlu0 %1459
        %1461 = vmax.xlane.f32.xlu0 %v1430
        %v1462 = vpop.xlane.xlu0 %1461
        %v1463 = vsub.f32 %v1415, %v1432
        %v1464 = vsub.f32 %v1416, %v1434
        %v1465 = vsub.f32 %v1417, %v1436
        %v1466 = vsub.f32 %v1418, %v1438
        %v1467 = vsub.f32 %v1419, %v1440
        %v1468 = vsub.f32 %v1420, %v1442
        %v1469 = vsub.f32 %v1421, %v1444
        %v1470 = vsub.f32 %v1422, %v1446
        %v1471 = vsub.f32 %v1423, %v1448
        %v1472 = vsub.f32 %v1424, %v1450
        %v1473 = vsub.f32 %v1425, %v1452
        %v1474 = vsub.f32 %v1426, %v1454
        %v1475 = vsub.f32 %v1427, %v1456
        %v1476 = vsub.f32 %v1428, %v1458
        %v1477 = vsub.f32 %v1429, %v1460
        %v1478 = vsub.f32 %v1430, %v1462
        %v1479 = vmul.f32 %v1463, 1.442695
        %v1480 = vpow.pop %v1479
        %v1481 = vmul.f32 %v1464, 1.442695
        %v1482 = vpow.pop %v1481
        %v1483 = vmul.f32 %v1465, 1.442695
        %v1484 = vpow.pop %v1483
        %v1485 = vmul.f32 %v1466, 1.442695
        %v1486 = vpow.pop %v1485
        %v1487 = vmul.f32 %v1467, 1.442695
        %v1488 = vpow.pop %v1487
        %v1489 = vmul.f32 %v1468, 1.442695
        %v1490 = vpow.pop %v1489
        %v1491 = vmul.f32 %v1469, 1.442695
        %v1492 = vpow.pop %v1491
        %v1493 = vmul.f32 %v1470, 1.442695
        %v1494 = vpow.pop %v1493
        %v1495 = vmul.f32 %v1471, 1.442695
        %v1496 = vpow.pop %v1495
        %v1497 = vmul.f32 %v1472, 1.442695
        %v1498 = vpow.pop %v1497
        %v1499 = vmul.f32 %v1473, 1.442695
        %v1500 = vpow.pop %v1499
        %v1501 = vmul.f32 %v1474, 1.442695
        %v1502 = vpow.pop %v1501
        %v1503 = vmul.f32 %v1475, 1.442695
        %v1504 = vpow.pop %v1503
        %v1505 = vmul.f32 %v1476, 1.442695
        %v1506 = vpow.pop %v1505
        %v1507 = vmul.f32 %v1477, 1.442695
        %v1508 = vpow.pop %v1507
        %v1509 = vmul.f32 %v1478, 1.442695
        %v1510 = vpow.pop %v1509
        %1511 = vadd.xlane.f32.xlu0 %v1480
        %v1512 = vpop.xlane.xlu0 %1511
        %1513 = vadd.xlane.f32.xlu0 %v1482
        %v1514 = vpop.xlane.xlu0 %1513
        %1515 = vadd.xlane.f32.xlu0 %v1484
        %v1516 = vpop.xlane.xlu0 %1515
        %1517 = vadd.xlane.f32.xlu0 %v1486
        %v1518 = vpop.xlane.xlu0 %1517
        %1519 = vadd.xlane.f32.xlu0 %v1488
        %v1520 = vpop.xlane.xlu0 %1519
        %1521 = vadd.xlane.f32.xlu0 %v1490
        %v1522 = vpop.xlane.xlu0 %1521
        %1523 = vadd.xlane.f32.xlu0 %v1492
        %v1524 = vpop.xlane.xlu0 %1523
        %1525 = vadd.xlane.f32.xlu0 %v1494
        %v1526 = vpop.xlane.xlu0 %1525
        %1527 = vadd.xlane.f32.xlu0 %v1496
        %v1528 = vpop.xlane.xlu0 %1527
        %1529 = vadd.xlane.f32.xlu0 %v1498
        %v1530 = vpop.xlane.xlu0 %1529
        %1531 = vadd.xlane.f32.xlu0 %v1500
        %v1532 = vpop.xlane.xlu0 %1531
        %1533 = vadd.xlane.f32.xlu0 %v1502
        %v1534 = vpop.xlane.xlu0 %1533
        %1535 = vadd.xlane.f32.xlu0 %v1504
        %v1536 = vpop.xlane.xlu0 %1535
        %1537 = vadd.xlane.f32.xlu0 %v1506
        %v1538 = vpop.xlane.xlu0 %1537
        %1539 = vadd.xlane.f32.xlu0 %v1508
        %v1540 = vpop.xlane.xlu0 %1539
        %1541 = vadd.xlane.f32.xlu0 %v1510
        %v1542 = vpop.xlane.xlu0 %1541
        %v1543 = vrcp.pop %v1512
        %v1544 = vmul.f32 %v1480, %v1543
        %v1545 = vrcp.pop %v1514
        %v1546 = vmul.f32 %v1482, %v1545
        %v1547 = vrcp.pop %v1516
        %v1548 = vmul.f32 %v1484, %v1547
        %v1549 = vrcp.pop %v1518
        %v1550 = vmul.f32 %v1486, %v1549
        %v1551 = vrcp.pop %v1520
        %v1552 = vmul.f32 %v1488, %v1551
        %v1553 = vrcp.pop %v1522
        %v1554 = vmul.f32 %v1490, %v1553
        %v1555 = vrcp.pop %v1524
        %v1556 = vmul.f32 %v1492, %v1555
        %v1557 = vrcp.pop %v1526
        %v1558 = vmul.f32 %v1494, %v1557
        %v1559 = vrcp.pop %v1528
        %v1560 = vmul.f32 %v1496, %v1559
        %v1561 = vrcp.pop %v1530
        %v1562 = vmul.f32 %v1498, %v1561
        %v1563 = vrcp.pop %v1532
        %v1564 = vmul.f32 %v1500, %v1563
        %v1565 = vrcp.pop %v1534
        %v1566 = vmul.f32 %v1502, %v1565
        %v1567 = vrcp.pop %v1536
        %v1568 = vmul.f32 %v1504, %v1567
        %v1569 = vrcp.pop %v1538
        %v1570 = vmul.f32 %v1506, %v1569
        %v1571 = vrcp.pop %v1540
        %v1572 = vmul.f32 %v1508, %v1571
        %v1573 = vrcp.pop %v1542
        %v1574 = vmul.f32 %v1510, %v1573
        %1575 = vst [vmem:[%s342] sm:$0xff] %v1544
        %1576 = vst [vmem:[%s342 + $0x8] sm:$0xff] %v1546
        %1577 = vst [vmem:[%s342 + $0x10] sm:$0xff] %v1548
        %1578 = vst [vmem:[%s342 + $0x18] sm:$0xff] %v1550
        %1579 = vst [vmem:[%s342 + $0x20] sm:$0xff] %v1552
        %1580 = vst [vmem:[%s342 + $0x28] sm:$0xff] %v1554
        %1581 = vst [vmem:[%s342 + $0x30] sm:$0xff] %v1556
        %1582 = vst [vmem:[%s342 + $0x38] sm:$0xff] %v1558
        %1583 = vst [vmem:[%s342 + $0x40] sm:$0xff] %v1560
        %1584 = vst [vmem:[%s342 + $0x48] sm:$0xff] %v1562
        %1585 = vst [vmem:[%s342 + $0x50] sm:$0xff] %v1564
        %1586 = vst [vmem:[%s342 + $0x58] sm:$0xff] %v1566
        %1587 = vst [vmem:[%s342 + $0x60] sm:$0xff] %v1568
        %1588 = vst [vmem:[%s342 + $0x68] sm:$0xff] %v1570
        %1589 = vst [vmem:[%s342 + $0x70] sm:$0xff] %v1572
        %1590 = vst [vmem:[%s342 + $0x78] sm:$0xff] %v1574
        %s1591 = sand.u32 %s188, 1
        %s1592 = scalar_lea.sflag [#allocation6], %s1591
        %s1593 = sand.u32 %s188, 1
        %s1594 = smul.addr %s1593, 128
        %s1595 = scalar_lea.vmem [#allocation12], %s1594
        // Predicated region
        $region65: #{tpu_custom_call.1} parent=47 // pred_check
          %p1596 = pneg %p198
        $region66: #{tpu_custom_call.1} parent=47 // pred_check_branch
          %1598 = sbr.rel (%p1596) target = $region68
        $region67: #{tpu_custom_call.1} parent=47 // pred_region
          %s1599 = smul.u32 16, %s28
          %s1601 = ssub.s32 2048, 2048
          %1602 = vsyncadd %s1592, %s1601
          %s1603 = smul.addr %s1599, 128
          %s1604 = scalar_lea.hbm %s8, %s1603
          %s1605 = sshll.u32 %s1595, 4
          %s1606 = int_to_ptr.vmem [resolvable:$true] %s1605
          %1611 = dma.vmem_to_hbm [thread:$0]  %s1606, 2048, %s1604, %s1592, 128, 128, 8
        $region68: #{tpu_custom_call.1} parent=47 // pred_fallthru
          _
      $region48: #{tpu_custom_call.1} parent=5 // pred_fallthru
        _
      %p1612 = scmp.le.s32.totalorder 2, %s23
      // Predicated region
      $region69: #{tpu_custom_call.1} parent=5 // pred_check
        %p1613 = pneg %p1612
      $region70: #{tpu_custom_call.1} parent=5 // pred_check_branch
        %1615 = sbr.rel (%p1613) target = $region72
      $region71: #{tpu_custom_call.1} parent=5 // pred_region
        %s1616 = ssub.s32 %s23, 2
        // Predicated region
        $region73: #{tpu_custom_call.1} parent=71 // pred_check
          %p1617 = pneg %p204
        $region74: #{tpu_custom_call.1} parent=71 // pred_check_branch
          %1619 = sbr.rel (%p1617) target = $region76
        $region75: #{tpu_custom_call.1} parent=71 // pred_region
          %s1620 = sand.u32 %s189, 1
          %s1621 = scalar_lea.sflag [#allocation6], %s1620
          %s1622 = sand.u32 %s189, 1
          %s1623 = smul.addr %s1622, 128
          %s1624 = scalar_lea.vmem [#allocation12], %s1623
          %1625 = dma.done %s1621, 2048
        $region76: #{tpu_custom_call.1} parent=71 // pred_fallthru
          _
      $region72: #{tpu_custom_call.1} parent=5 // pred_fallthru
        _
    $region6: #{tpu_custom_call.1} parent=1 // loop_footer
      %s27 = sadd.s32 1, %s23
    $region7: #{tpu_custom_call.1} parent=1 // loop_footer_branch
      %22 = sbr.rel target = $region3
    $region8: #{tpu_custom_call.1} parent=1 // loop_exit
      _
    %1626 = vsyncpa [#allocation5], 1
    %s1627 = scalar_lea.sflag [#allocation5], 1
    %1628 = vsyncpa %s1627, 1
    %1629 = vsyncpa [#allocation8], 1
    %1630 = vsyncpa [#allocation11], 1
    %1631 = vsyncpa [#allocation6], 1
    %s1632 = scalar_lea.sflag [#allocation6], 1
    %1633 = vsyncpa %s1632, 1

</llo_original>
